<compile_context>
chip_gen: v5e
topology: v5e:2x2
jax: 0.10.0
libtpu: 0.0.40
codegen_flags: <defaults>
</compile_context>

<pallas_src>
import functools

import jax
import jax.numpy as jnp
from jax.experimental import pallas as pl
from jax.experimental.pallas import tpu as pltpu

DTYPE = jnp.float32           # parameter / activation storage dtype
MATMUL_DTYPE = jnp.bfloat16   # MXU input dtype (accumulation stays f32)
EPS = 1e-5
NUM_LAYER_PARAMS = 12         # after QKV fusion
MLP_CHUNK = 512               # hidden-dim chunk size for the MLP


def _round_up(x, m):
    return (x + m - 1) // m * m


def _device_budget():
    """Per-generation VMEM limit and activation-block row target."""
    vmem_cap = 128 * 1024 * 1024
    try:
        info = pltpu.get_tpu_info()
        vmem_cap = int(getattr(info, "vmem_capacity_bytes", vmem_cap))
    except Exception:
        pass
    # v5e/v6e (128 MiB): ~100 MiB scoped limit; v7x (64 MiB): ~48 MiB with headroom.
    vmem_limit = max(32 * 1024 * 1024,
                     min(vmem_cap - 16 * 1024 * 1024, 100 * 1024 * 1024))
    target_rows = 2048 if vmem_cap >= 96 * 1024 * 1024 else 1024
    return vmem_limit, target_rows


# ----------------------------- shared math ------------------------------------

def _layernorm(h, g, b):
    mu = jnp.mean(h, axis=-1, keepdims=True)
    var = jnp.mean((h - mu) ** 2, axis=-1, keepdims=True)
    return (h - mu) * jax.lax.rsqrt(var + EPS) * g + b


def _quick_gelu(x):
    return x * jax.nn.sigmoid(1.702 * x)


def _mm(a, b):
    return jnp.dot(a.astype(MATMUL_DTYPE), b.astype(MATMUL_DTYPE),
                   preferred_element_type=jnp.float32)


def _split_heads(t, BB, S, H, hd):
    # (BB*S, D) -> (H*BB, S, hd): lane slices + major concat (proven Mosaic path).
    # TODO(synk): switch to a reshape/transpose (or pltpu.einshape) head split once the
    # (b,s,h,d)->(b,h,s,d) in-kernel transpose lowers cleanly; removes per-head copies.
    D = H * hd
    t3 = t.reshape(BB, S, D)
    return jnp.concatenate(
        [t3[:, :, hi * hd:(hi + 1) * hd] for hi in range(H)], axis=0)


def _merge_heads(ctx, BB, S, H, hd):
    # (H*BB, S, hd) -> (BB*S, D)
    ctx = jnp.concatenate([ctx[hi * BB:(hi + 1) * BB] for hi in range(H)], axis=-1)
    return ctx.reshape(BB * S, H * hd)


# ----------------------------- kernel-side layer math --------------------------

def _layer_math_2d(x, mask, w_refs, num_heads, BB, S):
    """One CLIP encoder layer on a flattened (BB*S, D) activation slab (f32)."""
    (ln1_g, ln1_b, wqkv_ref, bqkv_ref, wo_ref, bo_ref,
     ln2_g, ln2_b, w1_ref, b1_ref, w2_ref, b2_ref) = w_refs
    N, D = x.shape
    H = num_heads
    hd = D // H

    # ---- attention (pre-LN); 1/sqrt(hd) already folded into the Q weight/bias ----
    h = _layernorm(x, ln1_g[...], ln1_b[...])
    qkv = _mm(h, wqkv_ref[...]) + bqkv_ref[...]        # one fused (N, 3D) matmul
    q, k, v = qkv[:, :D], qkv[:, D:2 * D], qkv[:, 2 * D:]

    qh = _split_heads(q, BB, S, H, hd)
    kh = _split_heads(k, BB, S, H, hd)
    vh = _split_heads(v, BB, S, H, hd)

    s = jnp.einsum('bqd,bkd->bqk', qh.astype(MATMUL_DTYPE),
                   kh.astype(MATMUL_DTYPE),
                   preferred_element_type=jnp.float32)  # (H*BB, S, S), f32 scores
    s = s + mask[None]                                  # additive causal mask (resident)
    s = s - jnp.max(s, axis=-1, keepdims=True)
    p = jnp.exp(s)
    p = p * pl.reciprocal(jnp.sum(p, axis=-1, keepdims=True), approx=True)
    ctx = jnp.einsum('bqk,bkd->bqd', p.astype(MATMUL_DTYPE),
                     vh.astype(MATMUL_DTYPE),
                     preferred_element_type=jnp.float32)  # (H*BB, S, hd)

    ctx = _merge_heads(ctx, BB, S, H, hd)               # (N, D)
    x = x + _mm(ctx, wo_ref[...]) + bo_ref[...]

    # ---- MLP (pre-LN), hidden dim chunked to cap the live gelu slab ----
    h2 = _layernorm(x, ln2_g[...], ln2_b[...])
    M = w1_ref.shape[-1]
    out = x
    for lo in range(0, M, MLP_CHUNK):
        hi = min(M, lo + MLP_CHUNK)
        mc = _quick_gelu(_mm(h2, w1_ref[:, lo:hi]) + b1_ref[:, lo:hi])
        out = out + _mm(mc, w2_ref[lo:hi, :])
    return out + b2_ref[...]


# ----------------------------- fused transformer kernel ------------------------

def transformer_kernel(*refs, num_heads):
    x_ref, mask_ref = refs[0], refs[1]
    w_refs = refs[2:2 + NUM_LAYER_PARAMS]
    o_ref = refs[-1]
    layer = pl.program_id(1)

    @pl.when(layer == 0)
    def _():
        o_ref[...] = x_ref[...]       # prompts + pos-emb already folded in the wrapper

    BB, S, D = o_ref.shape
    x2d = o_ref[...].astype(jnp.float32).reshape(BB * S, D)
    y2d = _layer_math_2d(x2d, mask_ref[...], w_refs, num_heads, BB, S)
    o_ref[...] = y2d.reshape(BB, S, D).astype(o_ref.dtype)


def _weight_spec(w):
    zeros = (0,) * (w.ndim - 1)
    # Leading layer axis squeezed; indexed by the layer grid axis -> streamed/prefetched.
    return pl.BlockSpec((None,) + w.shape[1:], lambda bb, l, z=zeros: (l,) + z)


def pallas_transformer(x, stacked, num_heads):
    B0, S0, D = x.shape
    L = stacked[0].shape[0]
    vmem_limit, target_rows = _device_budget()

    # Pad seq to a sublane multiple; pick batch block from the row budget and pad B up
    # to a multiple of it (never fall back to BB=1 for awkward batch sizes).
    S = _round_up(S0, 8)
    BB = max(1, min(B0, target_rows // S))
    nblocks = pl.cdiv(B0, BB)
    # NOTE: on v7x an even nblocks (>=2) shards the "parallel" axis across both TCs.
    B = BB * nblocks
    if (B, S) != (B0, S0):
        x = jnp.pad(x, ((0, B - B0), (0, S - S0), (0, 0)))

    # Additive causal mask, precomputed once (padded key columns are masked for all
    # real query rows because col <= row < S0).
    row = jax.lax.broadcasted_iota(jnp.int32, (S, S), 0)
    col = jax.lax.broadcasted_iota(jnp.int32, (S, S), 1)
    mask = jnp.where(col <= row, 0.0, -1e9).astype(jnp.float32)

    act_spec = pl.BlockSpec((BB, S, D), lambda bb, l: (bb, 0, 0))
    out = pl.pallas_call(
        functools.partial(transformer_kernel, num_heads=num_heads),
        out_shape=jax.ShapeDtypeStruct((B, S, D), x.dtype),
        grid_spec=pltpu.PrefetchScalarGridSpec(
            num_scalar_prefetch=0,
            grid=(nblocks, L),
            in_specs=[act_spec,
                      pl.BlockSpec((S, S), lambda bb, l: (0, 0))]
                     + [_weight_spec(w) for w in stacked],
            out_specs=act_spec),              # same block across the layer axis -> resident
        compiler_params=pltpu.CompilerParams(
            dimension_semantics=("parallel", "arbitrary"),
            vmem_limit_bytes=vmem_limit),
        input_output_aliases={0: 0},          # donate the activation HBM buffer
    )(x, mask, *stacked)
    return out[:B0, :S0]


# ----------------------------- final LN + projection (batched over EOT rows) ----

def final_kernel(x_ref, g_ref, b_ref, proj_ref, o_ref):
    h = _layernorm(x_ref[...], g_ref[...], b_ref[...])
    o_ref[...] = _mm(h, proj_ref[...]).astype(o_ref.dtype)


def pallas_final(rows, lnf_g, lnf_b, proj):
    B0, D = rows.shape
    P = proj.shape[1]
    P_pad = _round_up(P, 128)                 # lane-dense output stores
    proj_p = jnp.pad(proj, ((0, 0), (0, P_pad - P))) if P_pad != P else proj

    RB = 128 if B0 > 128 else _round_up(B0, 8)
    B = _round_up(B0, RB)
    rows_p = jnp.pad(rows, ((0, B - B0), (0, 0))) if B != B0 else rows

    out = pl.pallas_call(
        final_kernel,
        out_shape=jax.ShapeDtypeStruct((B, P_pad), rows.dtype),
        grid_spec=pltpu.PrefetchScalarGridSpec(
            num_scalar_prefetch=0,
            grid=(B // RB,),
            in_specs=[pl.BlockSpec((RB, D), lambda i: (i, 0)),
                      pl.BlockSpec((1, D), lambda i: (0, 0)),
                      pl.BlockSpec((1, D), lambda i: (0, 0)),
                      pl.BlockSpec((D, P_pad), lambda i: (0, 0))],
            out_specs=pl.BlockSpec((RB, P_pad), lambda i: (i, 0))),
        compiler_params=pltpu.CompilerParams(
            dimension_semantics=("parallel",)),
    )(rows_p, lnf_g, lnf_b, proj_p.astype(MATMUL_DTYPE))
    return out[:B0, :P]


# ----------------------------- parameter stacking / forward --------------------

def stack_layer_params(layers, num_heads):
    """Fuse QKV (+ fold 1/sqrt(hd) into Q), cast matmul weights to bf16, stack on L."""
    fused = []
    for (ln1_g, ln1_b, wq, bq, wk, bk, wv, bv, wo, bo,
         ln2_g, ln2_b, w1, b1, w2, b2) in layers:
        D = wq.shape[0]
        scale = 1.0 / ((D // num_heads) ** 0.5)
        wqkv = jnp.concatenate([wq * scale, wk, wv], axis=1).astype(MATMUL_DTYPE)
        bqkv = jnp.concatenate([bq * scale, bk, bv], axis=1).astype(jnp.float32)
        fused.append((ln1_g, ln1_b, wqkv, bqkv,
                      wo.astype(MATMUL_DTYPE), bo,
                      ln2_g, ln2_b,
                      w1.astype(MATMUL_DTYPE), b1,
                      w2.astype(MATMUL_DTYPE), b2))
    return tuple(jnp.stack([lp[i] for lp in fused], axis=0)
                 for i in range(NUM_LAYER_PARAMS))


@functools.partial(jax.jit, static_argnames=("num_heads",))
def text_encoder_pallas(prompts, tokenized_prompts, params, *, num_heads):
    stacked = stack_layer_params(params["layers"], num_heads)
    x = prompts + params["pos_emb"]                      # fold pos-emb (plain-JAX glue)
    x = pallas_transformer(x, stacked, num_heads)
    # EOT index = argmax over token ids (CLIP's EOT token has the largest id).
    eot = jnp.argmax(tokenized_prompts, axis=-1)
    rows = x[jnp.arange(x.shape[0]), eot]                # gather EOT rows (plain JAX)
    return pallas_final(rows, params["lnf_g"], params["lnf_b"], params["proj"])


# ----------------------------- pure-JAX reference (f32, per-head) ---------------

def _layer_math_ref(x, params, num_heads):
    (ln1_g, ln1_b, wq, bq, wk, bk, wv, bv, wo, bo,
     ln2_g, ln2_b, w1, b1, w2, b2) = params
    S, D = x.shape
    hd = D // num_heads
    scale = 1.0 / (hd ** 0.5)

    h = _layernorm(x, ln1_g, ln1_b)
    q = jnp.dot(h, wq) + bq
    k = jnp.dot(h, wk) + bk
    v = jnp.dot(h, wv) + bv

    row = jax.lax.broadcasted_iota(jnp.int32, (S, S), 0)
    col = jax.lax.broadcasted_iota(jnp.int32, (S, S), 1)
    causal = col <= row

    attn = jnp.zeros((S, D), jnp.float32)
    for hi in range(num_heads):
        sl = slice(hi * hd, (hi + 1) * hd)
        s = (q[:, sl] * scale) @ k[:, sl].T
        s = jnp.where(causal, s, -1e9)
        p = jax.nn.softmax(s, axis=-1)
        attn = attn + (p @ v[:, sl]) @ wo[sl, :]
    x = x + attn + bo

    h2 = _layernorm(x, ln2_g, ln2_b)
    m = jnp.dot(_quick_gelu(jnp.dot(h2, w1) + b1), w2) + b2
    return x + m


def text_encoder_ref(prompts, tokenized_prompts, params, num_heads):
    x = prompts + params["pos_emb"]
    for lp in params["layers"]:
        x = jax.vmap(lambda xb: _layer_math_ref(xb, lp, num_heads))(x)
    eot = jnp.argmax(tokenized_prompts, axis=-1)
    h = _layernorm(x, params["lnf_g"], params["lnf_b"])
    rows = h[jnp.arange(x.shape[0]), eot]
    return jnp.dot(rows, params["proj"])


# ----------------------------- parameter init ----------------------------------

def init_params(key, S, D, M, P, num_layers):
    def dense(k, shape, scale=0.02):
        return (scale * jax.random.normal(k, shape)).astype(DTYPE)

    keys = jax.random.split(key, num_layers + 2)
    layers = []
    for li in range(num_layers):
        lk = jax.random.split(keys[li], 12)
        layers.append((
            jnp.ones((1, D), DTYPE), jnp.zeros((1, D), DTYPE),          # ln1 gamma/beta
            dense(lk[0], (D, D)), dense(lk[1], (1, D)),                 # Wq, bq
            dense(lk[2], (D, D)), dense(lk[3], (1, D)),                 # Wk, bk
            dense(lk[4], (D, D)), dense(lk[5], (1, D)),                 # Wv, bv
            dense(lk[6], (D, D)), dense(lk[7], (1, D)),                 # Wo, bo
            jnp.ones((1, D), DTYPE), jnp.zeros((1, D), DTYPE),          # ln2 gamma/beta
            dense(lk[8], (D, M)), dense(lk[9], (1, M)),                 # fc1
            dense(lk[10], (M, D)), dense(lk[11], (1, D)),               # fc2
        ))
    pos_emb = dense(keys[-2], (S, D))   # nn.Embedding table used as additive pos-emb
    proj = dense(keys[-1], (D, P))      # text_projection
    return {"layers": layers, "pos_emb": pos_emb,
            "lnf_g": jnp.ones((1, D), DTYPE), "lnf_b": jnp.zeros((1, D), DTYPE),
            "proj": proj}


# ----------------------------- main ---------------------------------------------

if __name__ == "__main__":
    B, S, D, H, M, P, L = 2, 8, 32, 2, 128, 16, 2   # batch, seq, hidden, heads, mlp, proj, layers
    key = jax.random.PRNGKey(0)
    kp, kx, kt = jax.random.split(key, 3)

    params = init_params(kp, S, D, M, P, L)
    prompts = (0.1 * jax.random.normal(kx, (B, S, D))).astype(DTYPE)
    tokenized_prompts = jax.random.randint(kt, (B, S), 0, 1000, dtype=jnp.int32)

    out = text_encoder_pallas(prompts, tokenized_prompts, params, num_heads=H)
    out = jax.block_until_ready(out)

    ref = text_encoder_ref(prompts, tokenized_prompts, params, H)
    assert out.shape == (B, P)
    err = float(jnp.max(jnp.abs(out - ref)))
    # bf16 matmul inputs (f32 accumulation) + approx softmax reciprocal -> widened tol
    # vs the pure-f32 reference.
    assert bool(jnp.allclose(out, ref, atol=2e-2, rtol=2e-2)), err
    print("KERNEL_OK")
</pallas_src>

<mosaic_0001>
module attributes {stable_mosaic.version = 11 : i64} {
  func.func @transformer_kernel(%arg0: i32, %arg1: i32, %arg2: memref<2x8x32xf32, #tpu.memory_space<vmem>>, %arg3: memref<8x8xf32, #tpu.memory_space<vmem>>, %arg4: memref<1x1x32xf32, #tpu.memory_space<vmem>>, %arg5: memref<1x1x32xf32, #tpu.memory_space<vmem>>, %arg6: memref<1x32x96xbf16, #tpu.memory_space<vmem>>, %arg7: memref<1x1x96xf32, #tpu.memory_space<vmem>>, %arg8: memref<1x32x32xbf16, #tpu.memory_space<vmem>>, %arg9: memref<1x1x32xf32, #tpu.memory_space<vmem>>, %arg10: memref<1x1x32xf32, #tpu.memory_space<vmem>>, %arg11: memref<1x1x32xf32, #tpu.memory_space<vmem>>, %arg12: memref<1x32x128xbf16, #tpu.memory_space<vmem>>, %arg13: memref<1x1x128xf32, #tpu.memory_space<vmem>>, %arg14: memref<1x128x32xbf16, #tpu.memory_space<vmem>>, %arg15: memref<1x1x32xf32, #tpu.memory_space<vmem>>, %arg16: memref<2x8x32xf32, #tpu.memory_space<vmem>>) attributes {dimension_semantics = [#tpu.dimension_semantics<parallel>, #tpu.dimension_semantics<arbitrary>], iteration_bounds = array<i64: 1, 2>, scalar_prefetch = 0 : i64, scratch_operands = 0 : i64, tpu.core_type = #tpu.core_type<tc>, window_params = [{transform_indices = @transform_0, window_bounds = array<i64: 2, 8, 32>}, {pipeline_mode = #tpu.pipeline_mode<synchronous>, transform_indices = @transform_1, window_bounds = array<i64: 8, 8>}, {transform_indices = @transform_2, window_bounds = array<i64: 1, 1, 32>}, {transform_indices = @transform_3, window_bounds = array<i64: 1, 1, 32>}, {transform_indices = @transform_4, window_bounds = array<i64: 1, 32, 96>}, {transform_indices = @transform_5, window_bounds = array<i64: 1, 1, 96>}, {transform_indices = @transform_6, window_bounds = array<i64: 1, 32, 32>}, {transform_indices = @transform_7, window_bounds = array<i64: 1, 1, 32>}, {transform_indices = @transform_8, window_bounds = array<i64: 1, 1, 32>}, {transform_indices = @transform_9, window_bounds = array<i64: 1, 1, 32>}, {transform_indices = @transform_10, window_bounds = array<i64: 1, 32, 128>}, {transform_indices = @transform_11, window_bounds = array<i64: 1, 1, 128>}, {transform_indices = @transform_12, window_bounds = array<i64: 1, 128, 32>}, {transform_indices = @transform_13, window_bounds = array<i64: 1, 1, 32>}, {transform_indices = @transform_14, window_bounds = array<i64: 2, 8, 32>}]} {
    %c0_i32 = arith.constant 0 : i32
    %0 = arith.cmpi eq, %arg1, %c0_i32 : i32
    %1 = arith.extui %0 : i1 to i32
    %c0_i32_0 = arith.constant 0 : i32
    %2 = arith.cmpi ne, %1, %c0_i32_0 : i32
    scf.if %2 {
      %c0_63 = arith.constant 0 : index
      %c0_64 = arith.constant 0 : index
      %c0_65 = arith.constant 0 : index
      %140 = vector.load %arg2[%c0_63, %c0_64, %c0_65] : memref<2x8x32xf32, #tpu.memory_space<vmem>>, vector<2x8x32xf32>
      %c0_66 = arith.constant 0 : index
      %c0_67 = arith.constant 0 : index
      %c0_68 = arith.constant 0 : index
      %141 = vector.load %arg16[%c0_66, %c0_67, %c0_68] : memref<2x8x32xf32, #tpu.memory_space<vmem>>, vector<2x8x32xf32>
      tpu.vector_store %arg16[%c0_66, %c0_67, %c0_68], %140 {strides = array<i32>} : memref<2x8x32xf32, #tpu.memory_space<vmem>>, vector<2x8x32xf32>,
    } else {
    }
    %c0 = arith.constant 0 : index
    %c0_1 = arith.constant 0 : index
    %c0_2 = arith.constant 0 : index
    %3 = vector.load %arg16[%c0, %c0_1, %c0_2] : memref<2x8x32xf32, #tpu.memory_space<vmem>>, vector<2x8x32xf32>
    %4 = vector.shape_cast %3 : vector<2x8x32xf32> to vector<16x32xf32>
    %c0_3 = arith.constant 0 : index
    %c0_4 = arith.constant 0 : index
    %5 = vector.load %arg3[%c0_3, %c0_4] : memref<8x8xf32, #tpu.memory_space<vmem>>, vector<8x8xf32>
    %c0_5 = arith.constant 0 : index
    %c0_6 = arith.constant 0 : index
    %c0_7 = arith.constant 0 : index
    %6 = vector.load %arg4[%c0_5, %c0_6, %c0_7] : memref<1x1x32xf32, #tpu.memory_space<vmem>>, vector<1x1x32xf32>
    %7 = vector.shape_cast %6 : vector<1x1x32xf32> to vector<1x32xf32>
    %c0_8 = arith.constant 0 : index
    %c0_9 = arith.constant 0 : index
    %c0_10 = arith.constant 0 : index
    %8 = vector.load %arg5[%c0_8, %c0_9, %c0_10] : memref<1x1x32xf32, #tpu.memory_space<vmem>>, vector<1x1x32xf32>
    %9 = vector.shape_cast %8 : vector<1x1x32xf32> to vector<1x32xf32>
    %cst = arith.constant dense<0.000000e+00> : vector<16xf32>
    %10 = vector.multi_reduction <add>, %4, %cst [1] : vector<16x32xf32> to vector<16xf32>
    %11 = vector.shape_cast %10 : vector<16xf32> to vector<16x1xf32>
    %cst_11 = arith.constant 3.200000e+01 : f32
    %12 = vector.broadcast %cst_11 : f32 to vector<16x1xf32>
    %13 = arith.divf %11, %12 : vector<16x1xf32>
    %14 = vector.broadcast %13 : vector<16x1xf32> to vector<16x32xf32>
    %15 = arith.subf %4, %14 : vector<16x32xf32>
    %16 = arith.mulf %15, %15 : vector<16x32xf32>
    %cst_12 = arith.constant dense<0.000000e+00> : vector<16xf32>
    %17 = vector.multi_reduction <add>, %16, %cst_12 [1] : vector<16x32xf32> to vector<16xf32>
    %18 = vector.shape_cast %17 : vector<16xf32> to vector<16x1xf32>
    %cst_13 = arith.constant 3.200000e+01 : f32
    %19 = vector.broadcast %cst_13 : f32 to vector<16x1xf32>
    %20 = arith.divf %18, %19 : vector<16x1xf32>
    %21 = vector.broadcast %13 : vector<16x1xf32> to vector<16x32xf32>
    %22 = arith.subf %4, %21 : vector<16x32xf32>
    %cst_14 = arith.constant 9.99999974E-6 : f32
    %23 = vector.broadcast %cst_14 : f32 to vector<16x1xf32>
    %24 = arith.addf %20, %23 : vector<16x1xf32>
    %25 = math.rsqrt %24 : vector<16x1xf32>
    %26 = vector.broadcast %25 : vector<16x1xf32> to vector<16x32xf32>
    %27 = arith.mulf %22, %26 : vector<16x32xf32>
    %28 = vector.broadcast %7 : vector<1x32xf32> to vector<16x32xf32>
    %29 = arith.mulf %27, %28 : vector<16x32xf32>
    %30 = vector.broadcast %9 : vector<1x32xf32> to vector<16x32xf32>
    %31 = arith.addf %29, %30 : vector<16x32xf32>
    %c0_15 = arith.constant 0 : index
    %c0_16 = arith.constant 0 : index
    %c0_17 = arith.constant 0 : index
    %32 = vector.load %arg6[%c0_15, %c0_16, %c0_17] : memref<1x32x96xbf16, #tpu.memory_space<vmem>>, vector<1x32x96xbf16>
    %33 = vector.shape_cast %32 : vector<1x32x96xbf16> to vector<32x96xbf16>
    %34 = arith.truncf %31 : vector<16x32xf32> to vector<16x32xbf16>
    %cst_18 = arith.constant dense<0.000000e+00> : vector<16x96xf32>
    %35 = tpu.matmul %34, %33, %cst_18 {dimension_numbers = #tpu.dot_dimension_numbers<[1], [0], [0], [1], [0, 0, 1, 1], [], []>} : vector<16x32xbf16>, vector<32x96xbf16>, vector<16x96xf32> -> vector<16x96xf32>
    %c0_19 = arith.constant 0 : index
    %c0_20 = arith.constant 0 : index
    %c0_21 = arith.constant 0 : index
    %36 = vector.load %arg7[%c0_19, %c0_20, %c0_21] : memref<1x1x96xf32, #tpu.memory_space<vmem>>, vector<1x1x96xf32>
    %37 = vector.shape_cast %36 : vector<1x1x96xf32> to vector<1x96xf32>
    %38 = vector.broadcast %37 : vector<1x96xf32> to vector<16x96xf32>
    %39 = arith.addf %35, %38 : vector<16x96xf32>
    %40 = vector.extract_strided_slice %39 {offsets = [0, 0], sizes = [16, 32], strides = [1, 1]} : vector<16x96xf32> to vector<16x32xf32>
    %41 = vector.extract_strided_slice %39 {offsets = [0, 32], sizes = [16, 32], strides = [1, 1]} : vector<16x96xf32> to vector<16x32xf32>
    %42 = vector.extract_strided_slice %39 {offsets = [0, 64], sizes = [16, 32], strides = [1, 1]} : vector<16x96xf32> to vector<16x32xf32>
    %43 = vector.shape_cast %40 : vector<16x32xf32> to vector<2x8x32xf32>
    %44 = vector.extract_strided_slice %43 {offsets = [0, 0, 0], sizes = [2, 8, 16], strides = [1, 1, 1]} : vector<2x8x32xf32> to vector<2x8x16xf32>
    %45 = vector.extract_strided_slice %43 {offsets = [0, 0, 16], sizes = [2, 8, 16], strides = [1, 1, 1]} : vector<2x8x32xf32> to vector<2x8x16xf32>
    %46 = tpu.concatenate %44, %45 in 0 : vector<2x8x16xf32>, vector<2x8x16xf32> -> vector<4x8x16xf32>
    %47 = vector.shape_cast %41 : vector<16x32xf32> to vector<2x8x32xf32>
    %48 = vector.extract_strided_slice %47 {offsets = [0, 0, 0], sizes = [2, 8, 16], strides = [1, 1, 1]} : vector<2x8x32xf32> to vector<2x8x16xf32>
    %49 = vector.extract_strided_slice %47 {offsets = [0, 0, 16], sizes = [2, 8, 16], strides = [1, 1, 1]} : vector<2x8x32xf32> to vector<2x8x16xf32>
    %50 = tpu.concatenate %48, %49 in 0 : vector<2x8x16xf32>, vector<2x8x16xf32> -> vector<4x8x16xf32>
    %51 = vector.shape_cast %42 : vector<16x32xf32> to vector<2x8x32xf32>
    %52 = vector.extract_strided_slice %51 {offsets = [0, 0, 0], sizes = [2, 8, 16], strides = [1, 1, 1]} : vector<2x8x32xf32> to vector<2x8x16xf32>
    %53 = vector.extract_strided_slice %51 {offsets = [0, 0, 16], sizes = [2, 8, 16], strides = [1, 1, 1]} : vector<2x8x32xf32> to vector<2x8x16xf32>
    %54 = tpu.concatenate %52, %53 in 0 : vector<2x8x16xf32>, vector<2x8x16xf32> -> vector<4x8x16xf32>
    %55 = arith.truncf %46 : vector<4x8x16xf32> to vector<4x8x16xbf16>
    %56 = arith.truncf %50 : vector<4x8x16xf32> to vector<4x8x16xbf16>
    "tpu.trace_start"() <{level = 10 : i32, message = "bqd,bkd->bqk"}> : () -> ()
    %cst_22 = arith.constant dense<0.000000e+00> : vector<4x8x8xf32>
    %57 = tpu.matmul %55, %56, %cst_22 {dimension_numbers = #tpu.dot_dimension_numbers<[2], [2], [1], [1], [0, 0, 0, 1, 1, 1], [0], [0]>} : vector<4x8x16xbf16>, vector<4x8x16xbf16>, vector<4x8x8xf32> -> vector<4x8x8xf32>
    "tpu.trace_stop"() : () -> ()
    %58 = vector.shape_cast %5 : vector<8x8xf32> to vector<1x8x8xf32>
    %59 = vector.broadcast %58 : vector<1x8x8xf32> to vector<4x8x8xf32>
    %60 = arith.addf %57, %59 : vector<4x8x8xf32>
    %cst_23 = arith.constant dense<0xFF800000> : vector<4x8xf32>
    %61 = vector.multi_reduction <maximumf>, %60, %cst_23 [2] : vector<4x8x8xf32> to vector<4x8xf32>
    %62 = vector.shape_cast %61 : vector<4x8xf32> to vector<4x8x1xf32>
    %63 = vector.broadcast %62 : vector<4x8x1xf32> to vector<4x8x8xf32>
    %64 = arith.subf %60, %63 : vector<4x8x8xf32>
    %65 = math.exp %64 : vector<4x8x8xf32>
    %cst_24 = arith.constant dense<0.000000e+00> : vector<4x8xf32>
    %66 = vector.multi_reduction <add>, %65, %cst_24 [2] : vector<4x8x8xf32> to vector<4x8xf32>
    %67 = vector.shape_cast %66 : vector<4x8xf32> to vector<4x8x1xf32>
    %68 = tpu.reciprocal %67 {approx = true} : vector<4x8x1xf32> -> vector<4x8x1xf32>
    %69 = vector.broadcast %68 : vector<4x8x1xf32> to vector<4x8x8xf32>
    %70 = arith.mulf %65, %69 : vector<4x8x8xf32>
    %71 = arith.truncf %70 : vector<4x8x8xf32> to vector<4x8x8xbf16>
    %72 = arith.truncf %54 : vector<4x8x16xf32> to vector<4x8x16xbf16>
    "tpu.trace_start"() <{level = 10 : i32, message = "bqk,bkd->bqd"}> : () -> ()
    %cst_25 = arith.constant dense<0.000000e+00> : vector<4x8x16xf32>
    %73 = tpu.matmul %71, %72, %cst_25 {dimension_numbers = #tpu.dot_dimension_numbers<[2], [1], [1], [2], [0, 0, 0, 1, 1, 2], [0], [0]>} : vector<4x8x8xbf16>, vector<4x8x16xbf16>, vector<4x8x16xf32> -> vector<4x8x16xf32>
    "tpu.trace_stop"() : () -> ()
    %74 = vector.extract_strided_slice %73 {offsets = [0, 0, 0], sizes = [2, 8, 16], strides = [1, 1, 1]} : vector<4x8x16xf32> to vector<2x8x16xf32>
    %75 = vector.extract_strided_slice %73 {offsets = [2, 0, 0], sizes = [2, 8, 16], strides = [1, 1, 1]} : vector<4x8x16xf32> to vector<2x8x16xf32>
    %76 = tpu.concatenate %74, %75 in 2 : vector<2x8x16xf32>, vector<2x8x16xf32> -> vector<2x8x32xf32>
    %77 = vector.shape_cast %76 : vector<2x8x32xf32> to vector<16x32xf32>
    %c0_26 = arith.constant 0 : index
    %c0_27 = arith.constant 0 : index
    %c0_28 = arith.constant 0 : index
    %78 = vector.load %arg8[%c0_26, %c0_27, %c0_28] : memref<1x32x32xbf16, #tpu.memory_space<vmem>>, vector<1x32x32xbf16>
    %79 = vector.shape_cast %78 : vector<1x32x32xbf16> to vector<32x32xbf16>
    %80 = arith.truncf %77 : vector<16x32xf32> to vector<16x32xbf16>
    %cst_29 = arith.constant dense<0.000000e+00> : vector<16x32xf32>
    %81 = tpu.matmul %80, %79, %cst_29 {dimension_numbers = #tpu.dot_dimension_numbers<[1], [0], [0], [1], [0, 0, 1, 1], [], []>} : vector<16x32xbf16>, vector<32x32xbf16>, vector<16x32xf32> -> vector<16x32xf32>
    %82 = arith.addf %4, %81 : vector<16x32xf32>
    %c0_30 = arith.constant 0 : index
    %c0_31 = arith.constant 0 : index
    %c0_32 = arith.constant 0 : index
    %83 = vector.load %arg9[%c0_30, %c0_31, %c0_32] : memref<1x1x32xf32, #tpu.memory_space<vmem>>, vector<1x1x32xf32>
    %84 = vector.shape_cast %83 : vector<1x1x32xf32> to vector<1x32xf32>
    %85 = vector.broadcast %84 : vector<1x32xf32> to vector<16x32xf32>
    %86 = arith.addf %82, %85 : vector<16x32xf32>
    %c0_33 = arith.constant 0 : index
    %c0_34 = arith.constant 0 : index
    %c0_35 = arith.constant 0 : index
    %87 = vector.load %arg10[%c0_33, %c0_34, %c0_35] : memref<1x1x32xf32, #tpu.memory_space<vmem>>, vector<1x1x32xf32>
    %88 = vector.shape_cast %87 : vector<1x1x32xf32> to vector<1x32xf32>
    %c0_36 = arith.constant 0 : index
    %c0_37 = arith.constant 0 : index
    %c0_38 = arith.constant 0 : index
    %89 = vector.load %arg11[%c0_36, %c0_37, %c0_38] : memref<1x1x32xf32, #tpu.memory_space<vmem>>, vector<1x1x32xf32>
    %90 = vector.shape_cast %89 : vector<1x1x32xf32> to vector<1x32xf32>
    %cst_39 = arith.constant dense<0.000000e+00> : vector<16xf32>
    %91 = vector.multi_reduction <add>, %86, %cst_39 [1] : vector<16x32xf32> to vector<16xf32>
    %92 = vector.shape_cast %91 : vector<16xf32> to vector<16x1xf32>
    %cst_40 = arith.constant 3.200000e+01 : f32
    %93 = vector.broadcast %cst_40 : f32 to vector<16x1xf32>
    %94 = arith.divf %92, %93 : vector<16x1xf32>
    %95 = vector.broadcast %94 : vector<16x1xf32> to vector<16x32xf32>
    %96 = arith.subf %86, %95 : vector<16x32xf32>
    %97 = arith.mulf %96, %96 : vector<16x32xf32>
    %cst_41 = arith.constant dense<0.000000e+00> : vector<16xf32>
    %98 = vector.multi_reduction <add>, %97, %cst_41 [1] : vector<16x32xf32> to vector<16xf32>
    %99 = vector.shape_cast %98 : vector<16xf32> to vector<16x1xf32>
    %cst_42 = arith.constant 3.200000e+01 : f32
    %100 = vector.broadcast %cst_42 : f32 to vector<16x1xf32>
    %101 = arith.divf %99, %100 : vector<16x1xf32>
    %102 = vector.broadcast %94 : vector<16x1xf32> to vector<16x32xf32>
    %103 = arith.subf %86, %102 : vector<16x32xf32>
    %cst_43 = arith.constant 9.99999974E-6 : f32
    %104 = vector.broadcast %cst_43 : f32 to vector<16x1xf32>
    %105 = arith.addf %101, %104 : vector<16x1xf32>
    %106 = math.rsqrt %105 : vector<16x1xf32>
    %107 = vector.broadcast %106 : vector<16x1xf32> to vector<16x32xf32>
    %108 = arith.mulf %103, %107 : vector<16x32xf32>
    %109 = vector.broadcast %88 : vector<1x32xf32> to vector<16x32xf32>
    %110 = arith.mulf %108, %109 : vector<16x32xf32>
    %111 = vector.broadcast %90 : vector<1x32xf32> to vector<16x32xf32>
    %112 = arith.addf %110, %111 : vector<16x32xf32>
    %c0_44 = arith.constant 0 : index
    %c0_45 = arith.constant 0 : index
    %c0_46 = arith.constant 0 : index
    %113 = vector.load %arg12[%c0_44, %c0_45, %c0_46] : memref<1x32x128xbf16, #tpu.memory_space<vmem>>, vector<1x32x128xbf16>
    %114 = vector.shape_cast %113 : vector<1x32x128xbf16> to vector<32x128xbf16>
    %115 = arith.truncf %112 : vector<16x32xf32> to vector<16x32xbf16>
    %cst_47 = arith.constant dense<0.000000e+00> : vector<16x128xf32>
    %116 = tpu.matmul %115, %114, %cst_47 {dimension_numbers = #tpu.dot_dimension_numbers<[1], [0], [0], [1], [0, 0, 1, 1], [], []>} : vector<16x32xbf16>, vector<32x128xbf16>, vector<16x128xf32> -> vector<16x128xf32>
    %c0_48 = arith.constant 0 : index
    %c0_49 = arith.constant 0 : index
    %c0_50 = arith.constant 0 : index
    %117 = vector.load %arg13[%c0_48, %c0_49, %c0_50] : memref<1x1x128xf32, #tpu.memory_space<vmem>>, vector<1x1x128xf32>
    %118 = vector.shape_cast %117 : vector<1x1x128xf32> to vector<1x128xf32>
    %119 = vector.broadcast %118 : vector<1x128xf32> to vector<16x128xf32>
    %120 = arith.addf %116, %119 : vector<16x128xf32>
    %cst_51 = arith.constant 1.702000e+00 : f32
    %121 = vector.broadcast %cst_51 : f32 to vector<16x128xf32>
    %122 = arith.mulf %121, %120 : vector<16x128xf32>
    %123 = arith.negf %122 : vector<16x128xf32>
    %124 = math.exp %123 : vector<16x128xf32>
    %cst_52 = arith.constant 1.000000e+00 : f32
    %125 = vector.broadcast %cst_52 : f32 to vector<16x128xf32>
    %126 = arith.addf %125, %124 : vector<16x128xf32>
    %127 = arith.divf %125, %126 : vector<16x128xf32>
    %128 = arith.mulf %120, %127 : vector<16x128xf32>
    %c0_53 = arith.constant 0 : index
    %c0_54 = arith.constant 0 : index
    %c0_55 = arith.constant 0 : index
    %129 = vector.load %arg14[%c0_53, %c0_54, %c0_55] : memref<1x128x32xbf16, #tpu.memory_space<vmem>>, vector<1x128x32xbf16>
    %130 = vector.shape_cast %129 : vector<1x128x32xbf16> to vector<128x32xbf16>
    %131 = arith.truncf %128 : vector<16x128xf32> to vector<16x128xbf16>
    %cst_56 = arith.constant dense<0.000000e+00> : vector<16x32xf32>
    %132 = tpu.matmul %131, %130, %cst_56 {dimension_numbers = #tpu.dot_dimension_numbers<[1], [0], [0], [1], [0, 0, 1, 1], [], []>} : vector<16x128xbf16>, vector<128x32xbf16>, vector<16x32xf32> -> vector<16x32xf32>
    %133 = arith.addf %86, %132 : vector<16x32xf32>
    %c0_57 = arith.constant 0 : index
    %c0_58 = arith.constant 0 : index
    %c0_59 = arith.constant 0 : index
    %134 = vector.load %arg15[%c0_57, %c0_58, %c0_59] : memref<1x1x32xf32, #tpu.memory_space<vmem>>, vector<1x1x32xf32>
    %135 = vector.shape_cast %134 : vector<1x1x32xf32> to vector<1x32xf32>
    %136 = vector.broadcast %135 : vector<1x32xf32> to vector<16x32xf32>
    %137 = arith.addf %133, %136 : vector<16x32xf32>
    %138 = vector.shape_cast %137 : vector<16x32xf32> to vector<2x8x32xf32>
    %c0_60 = arith.constant 0 : index
    %c0_61 = arith.constant 0 : index
    %c0_62 = arith.constant 0 : index
    %139 = vector.load %arg16[%c0_60, %c0_61, %c0_62] : memref<2x8x32xf32, #tpu.memory_space<vmem>>, vector<2x8x32xf32>
    tpu.vector_store %arg16[%c0_60, %c0_61, %c0_62], %138 {strides = array<i32>} : memref<2x8x32xf32, #tpu.memory_space<vmem>>, vector<2x8x32xf32>,
    return
  }
  func.func @transform_0(%arg0: i32, %arg1: i32) -> (i32, i32, i32) {
    %c0_i32 = arith.constant 0 : i32
    %c0_i32_0 = arith.constant 0 : i32
    %c0_i32_1 = arith.constant 0 : i32
    return %arg0, %c0_i32, %c0_i32_0 : i32, i32, i32
  }
  func.func @transform_1(%arg0: i32, %arg1: i32) -> (i32, i32) {
    %c0_i32 = arith.constant 0 : i32
    %c0_i32_0 = arith.constant 0 : i32
    %c0_i32_1 = arith.constant 0 : i32
    return %c0_i32, %c0_i32_0 : i32, i32
  }
  func.func @transform_2(%arg0: i32, %arg1: i32) -> (i32, i32, i32) {
    %c0_i32 = arith.constant 0 : i32
    %c0_i32_0 = arith.constant 0 : i32
    %c0_i32_1 = arith.constant 0 : i32
    return %arg1, %c0_i32, %c0_i32_0 : i32, i32, i32
  }
  func.func @transform_3(%arg0: i32, %arg1: i32) -> (i32, i32, i32) {
    %c0_i32 = arith.constant 0 : i32
    %c0_i32_0 = arith.constant 0 : i32
    %c0_i32_1 = arith.constant 0 : i32
    return %arg1, %c0_i32, %c0_i32_0 : i32, i32, i32
  }
  func.func @transform_4(%arg0: i32, %arg1: i32) -> (i32, i32, i32) {
    %c0_i32 = arith.constant 0 : i32
    %c0_i32_0 = arith.constant 0 : i32
    %c0_i32_1 = arith.constant 0 : i32
    return %arg1, %c0_i32, %c0_i32_0 : i32, i32, i32
  }
  func.func @transform_5(%arg0: i32, %arg1: i32) -> (i32, i32, i32) {
    %c0_i32 = arith.constant 0 : i32
    %c0_i32_0 = arith.constant 0 : i32
    %c0_i32_1 = arith.constant 0 : i32
    return %arg1, %c0_i32, %c0_i32_0 : i32, i32, i32
  }
  func.func @transform_6(%arg0: i32, %arg1: i32) -> (i32, i32, i32) {
    %c0_i32 = arith.constant 0 : i32
    %c0_i32_0 = arith.constant 0 : i32
    %c0_i32_1 = arith.constant 0 : i32
    return %arg1, %c0_i32, %c0_i32_0 : i32, i32, i32
  }
  func.func @transform_7(%arg0: i32, %arg1: i32) -> (i32, i32, i32) {
    %c0_i32 = arith.constant 0 : i32
    %c0_i32_0 = arith.constant 0 : i32
    %c0_i32_1 = arith.constant 0 : i32
    return %arg1, %c0_i32, %c0_i32_0 : i32, i32, i32
  }
  func.func @transform_8(%arg0: i32, %arg1: i32) -> (i32, i32, i32) {
    %c0_i32 = arith.constant 0 : i32
    %c0_i32_0 = arith.constant 0 : i32
    %c0_i32_1 = arith.constant 0 : i32
    return %arg1, %c0_i32, %c0_i32_0 : i32, i32, i32
  }
  func.func @transform_9(%arg0: i32, %arg1: i32) -> (i32, i32, i32) {
    %c0_i32 = arith.constant 0 : i32
    %c0_i32_0 = arith.constant 0 : i32
    %c0_i32_1 = arith.constant 0 : i32
    return %arg1, %c0_i32, %c0_i32_0 : i32, i32, i32
  }
  func.func @transform_10(%arg0: i32, %arg1: i32) -> (i32, i32, i32) {
    %c0_i32 = arith.constant 0 : i32
    %c0_i32_0 = arith.constant 0 : i32
    %c0_i32_1 = arith.constant 0 : i32
    return %arg1, %c0_i32, %c0_i32_0 : i32, i32, i32
  }
  func.func @transform_11(%arg0: i32, %arg1: i32) -> (i32, i32, i32) {
    %c0_i32 = arith.constant 0 : i32
    %c0_i32_0 = arith.constant 0 : i32
    %c0_i32_1 = arith.constant 0 : i32
    return %arg1, %c0_i32, %c0_i32_0 : i32, i32, i32
  }
  func.func @transform_12(%arg0: i32, %arg1: i32) -> (i32, i32, i32) {
    %c0_i32 = arith.constant 0 : i32
    %c0_i32_0 = arith.constant 0 : i32
    %c0_i32_1 = arith.constant 0 : i32
    return %arg1, %c0_i32, %c0_i32_0 : i32, i32, i32
  }
  func.func @transform_13(%arg0: i32, %arg1: i32) -> (i32, i32, i32) {
    %c0_i32 = arith.constant 0 : i32
    %c0_i32_0 = arith.constant 0 : i32
    %c0_i32_1 = arith.constant 0 : i32
    return %arg1, %c0_i32, %c0_i32_0 : i32, i32, i32
  }
  func.func @transform_14(%arg0: i32, %arg1: i32) -> (i32, i32, i32) {
    %c0_i32 = arith.constant 0 : i32
    %c0_i32_0 = arith.constant 0 : i32
    %c0_i32_1 = arith.constant 0 : i32
    return %arg0, %c0_i32, %c0_i32_0 : i32, i32, i32
  }
}

module attributes {stable_mosaic.version = 11 : i64} {
  func.func @final_kernel(%arg0: i32, %arg1: memref<8x32xf32, #tpu.memory_space<vmem>>, %arg2: memref<1x32xf32, #tpu.memory_space<vmem>>, %arg3: memref<1x32xf32, #tpu.memory_space<vmem>>, %arg4: memref<32x128xbf16, #tpu.memory_space<vmem>>, %arg5: memref<8x128xf32, #tpu.memory_space<vmem>>) attributes {dimension_semantics = [#tpu.dimension_semantics<parallel>], iteration_bounds = array<i64: 1>, scalar_prefetch = 0 : i64, scratch_operands = 0 : i64, tpu.core_type = #tpu.core_type<tc>, window_params = [{transform_indices = @transform_0, window_bounds = array<i64: 8, 32>}, {pipeline_mode = #tpu.pipeline_mode<synchronous>, transform_indices = @transform_1, window_bounds = array<i64: 1, 32>}, {pipeline_mode = #tpu.pipeline_mode<synchronous>, transform_indices = @transform_2, window_bounds = array<i64: 1, 32>}, {pipeline_mode = #tpu.pipeline_mode<synchronous>, transform_indices = @transform_3, window_bounds = array<i64: 32, 128>}, {transform_indices = @transform_4, window_bounds = array<i64: 8, 128>}]} {
    %c0 = arith.constant 0 : index
    %c0_0 = arith.constant 0 : index
    %0 = vector.load %arg1[%c0, %c0_0] : memref<8x32xf32, #tpu.memory_space<vmem>>, vector<8x32xf32>
    %c0_1 = arith.constant 0 : index
    %c0_2 = arith.constant 0 : index
    %1 = vector.load %arg2[%c0_1, %c0_2] : memref<1x32xf32, #tpu.memory_space<vmem>>, vector<1x32xf32>
    %c0_3 = arith.constant 0 : index
    %c0_4 = arith.constant 0 : index
    %2 = vector.load %arg3[%c0_3, %c0_4] : memref<1x32xf32, #tpu.memory_space<vmem>>, vector<1x32xf32>
    %cst = arith.constant dense<0.000000e+00> : vector<8xf32>
    %3 = vector.multi_reduction <add>, %0, %cst [1] : vector<8x32xf32> to vector<8xf32>
    %4 = vector.shape_cast %3 : vector<8xf32> to vector<8x1xf32>
    %cst_5 = arith.constant 3.200000e+01 : f32
    %5 = vector.broadcast %cst_5 : f32 to vector<8x1xf32>
    %6 = arith.divf %4, %5 : vector<8x1xf32>
    %7 = vector.broadcast %6 : vector<8x1xf32> to vector<8x32xf32>
    %8 = arith.subf %0, %7 : vector<8x32xf32>
    %9 = arith.mulf %8, %8 : vector<8x32xf32>
    %cst_6 = arith.constant dense<0.000000e+00> : vector<8xf32>
    %10 = vector.multi_reduction <add>, %9, %cst_6 [1] : vector<8x32xf32> to vector<8xf32>
    %11 = vector.shape_cast %10 : vector<8xf32> to vector<8x1xf32>
    %cst_7 = arith.constant 3.200000e+01 : f32
    %12 = vector.broadcast %cst_7 : f32 to vector<8x1xf32>
    %13 = arith.divf %11, %12 : vector<8x1xf32>
    %14 = vector.broadcast %6 : vector<8x1xf32> to vector<8x32xf32>
    %15 = arith.subf %0, %14 : vector<8x32xf32>
    %cst_8 = arith.constant 9.99999974E-6 : f32
    %16 = vector.broadcast %cst_8 : f32 to vector<8x1xf32>
    %17 = arith.addf %13, %16 : vector<8x1xf32>
    %18 = math.rsqrt %17 : vector<8x1xf32>
    %19 = vector.broadcast %18 : vector<8x1xf32> to vector<8x32xf32>
    %20 = arith.mulf %15, %19 : vector<8x32xf32>
    %21 = vector.broadcast %1 : vector<1x32xf32> to vector<8x32xf32>
    %22 = arith.mulf %20, %21 : vector<8x32xf32>
    %23 = vector.broadcast %2 : vector<1x32xf32> to vector<8x32xf32>
    %24 = arith.addf %22, %23 : vector<8x32xf32>
    %c0_9 = arith.constant 0 : index
    %c0_10 = arith.constant 0 : index
    %25 = vector.load %arg4[%c0_9, %c0_10] : memref<32x128xbf16, #tpu.memory_space<vmem>>, vector<32x128xbf16>
    %26 = arith.truncf %24 : vector<8x32xf32> to vector<8x32xbf16>
    %cst_11 = arith.constant dense<0.000000e+00> : vector<8x128xf32>
    %27 = tpu.matmul %26, %25, %cst_11 {dimension_numbers = #tpu.dot_dimension_numbers<[1], [0], [0], [1], [0, 0, 1, 1], [], []>} : vector<8x32xbf16>, vector<32x128xbf16>, vector<8x128xf32> -> vector<8x128xf32>
    %c0_12 = arith.constant 0 : index
    %c0_13 = arith.constant 0 : index
    %28 = vector.load %arg5[%c0_12, %c0_13] : memref<8x128xf32, #tpu.memory_space<vmem>>, vector<8x128xf32>
    tpu.vector_store %arg5[%c0_12, %c0_13], %27 {strides = array<i32>} : memref<8x128xf32, #tpu.memory_space<vmem>>, vector<8x128xf32>,
    return
  }
  func.func @transform_0(%arg0: i32) -> (i32, i32) {
    %c0_i32 = arith.constant 0 : i32
    %c0_i32_0 = arith.constant 0 : i32
    return %arg0, %c0_i32 : i32, i32
  }
  func.func @transform_1(%arg0: i32) -> (i32, i32) {
    %c0_i32 = arith.constant 0 : i32
    %c0_i32_0 = arith.constant 0 : i32
    %c0_i32_1 = arith.constant 0 : i32
    return %c0_i32, %c0_i32_0 : i32, i32
  }
  func.func @transform_2(%arg0: i32) -> (i32, i32) {
    %c0_i32 = arith.constant 0 : i32
    %c0_i32_0 = arith.constant 0 : i32
    %c0_i32_1 = arith.constant 0 : i32
    return %c0_i32, %c0_i32_0 : i32, i32
  }
  func.func @transform_3(%arg0: i32) -> (i32, i32) {
    %c0_i32 = arith.constant 0 : i32
    %c0_i32_0 = arith.constant 0 : i32
    %c0_i32_1 = arith.constant 0 : i32
    return %c0_i32, %c0_i32_0 : i32, i32
  }
  func.func @transform_4(%arg0: i32) -> (i32, i32) {
    %c0_i32 = arith.constant 0 : i32
    %c0_i32_0 = arith.constant 0 : i32
    return %arg0, %c0_i32 : i32, i32
  }
}

</mosaic_0001>

<llo_original>
// kernel: text_encoder_pallas.3
$region0: #{text_encoder_pallas.3}
  #allocation0 [shape = 'u32[]', space=smem, size = 0x4, offset = 0x4, fixed_abs, tag = 'smem constant byte address 0x4 - core index']
  #allocation1 [shape = 'u32[72,128]{1,0:T(1,128)}', space=vmem, size = 0x9000, scoped, tag = 'internal scratch']
  %s0 = inlined_call_operand.vmem [shape: f32[8,32], index: 0, kind: input, shape index: {}]
  %s1 = inlined_call_operand.vmem [shape: f32[1,32], index: 1, kind: input, shape index: {}]
  %s2 = inlined_call_operand.vmem [shape: f32[1,32], index: 2, kind: input, shape index: {}]
  %s3 = inlined_call_operand.vmem [shape: bf16[32,128], index: 3, kind: input, shape index: {}]
  %s4 = inlined_call_operand.vmem [shape: f32[8,128], index: 4, kind: output, shape index: {}]
  %s5 = sld [smem:[#allocation0]]
  $region26: #{text_encoder_pallas.3} parent=0
    _
  %s7 = ssub.s32 1, %s5
  %s8 = scalar_select 0, %s7, %s5
  // Predicated region
  $region2: #{text_encoder_pallas.3} parent=0 // pred_check
    _
  $region3: #{text_encoder_pallas.3} parent=0 // pred_check_branch
    %10 = sbr.rel (0) target = $region5
  $region4: #{text_encoder_pallas.3} parent=0 // pred_region
    _
  $region5: #{text_encoder_pallas.3} parent=0 // pred_fallthru
    _
  // Predicated region
  $region6: #{text_encoder_pallas.3} parent=0 // pred_check
    _
  $region7: #{text_encoder_pallas.3} parent=0 // pred_check_branch
    %12 = sbr.rel (0) target = $region9
  $region8: #{text_encoder_pallas.3} parent=0 // pred_region
    _
  $region9: #{text_encoder_pallas.3} parent=0 // pred_fallthru
    _
  // Predicated region
  $region10: #{text_encoder_pallas.3} parent=0 // pred_check
    _
  $region11: #{text_encoder_pallas.3} parent=0 // pred_check_branch
    %14 = sbr.rel (0) target = $region13
  $region12: #{text_encoder_pallas.3} parent=0 // pred_region
    _
  $region13: #{text_encoder_pallas.3} parent=0 // pred_fallthru
    _
  // Predicated region
  $region14: #{text_encoder_pallas.3} parent=0 // pred_check
    _
  $region15: #{text_encoder_pallas.3} parent=0 // pred_check_branch
    %16 = sbr.rel (0) target = $region17
  $region16: #{text_encoder_pallas.3} parent=0 // pred_region
    _
  $region17: #{text_encoder_pallas.3} parent=0 // pred_fallthru
    _
  %v18 = vld [vmem:[%s0] sm:$0xff]
  %v19 = vld [vmem:[%s1] sm:$0x1]
  %v20 = vld [vmem:[%s2] sm:$0x1]
  %vm21 = vcmask 261120
  %v22 = vsel %vm21, %v18, 0.0
  %23 = vadd.xlane.f32.xlu0 %v22
  %v24 = vpop.xlane.xlu0 %23
  %v25 = vrcp.pop 32.0
  %v26 = vmul.f32 32.0, %v25
  %v27 = vsub.f32 1.0, %v26
  %v28 = vmul.f32 %v25, %v27
  %v29 = vadd.f32 %v25, %v28
  %vm30 = vweird.f32 %v25
  %v31 = vsel %vm30, %v25, %v29
  %v32 = vmul.f32 %v24, %v31
  %v33 = vsub.f32 %v18, %v32
  %v34 = vmul.f32 %v33, %v33
  %v35 = vsel %vm21, %v34, 0.0
  %36 = vadd.xlane.f32.xlu0 %v35
  %v37 = vpop.xlane.xlu0 %36
  %v38 = vmul.f32 %v37, %v31
  %v39 = vadd.f32 %v38, 1e-05
  %v40 = vrsqrt.pop %v39
  %v41 = vmul.f32 %v40, %v39
  %v42 = vmul.f32 %v41, %v40
  %v43 = vmul.f32 0.5, %v42
  %v44 = vsub.f32 1.5, %v43
  %v45 = vmul.f32 %v40, %v44
  %vm46 = vweird.f32 %v39
  %vm47 = vweird.f32 %v40
  %vm48 = vmor %vm46, %vm47
  %v49 = vsel %vm48, %v40, %v45
  %v50 = vmul.f32 %v33, %v49
  %v52 = vperm.slane %v19, 0
  %v54 = vmul.f32 %v50, %v52
  %v56 = vperm.slane %v20, 0
  %v58 = vadd.f32 %v54, %v56
  %v59 = vld [vmem:[%s3] sm:$0xf]
  %v60 = vld [vmem:[%s3 + $0x4] sm:$0xf]
  %v61 = vld [vmem:[%s3 + $0x8] sm:$0xf]
  %v62 = vld [vmem:[%s3 + $0xc] sm:$0xf]
  %v63 = vpack.c.bf16 %v58, %v58
  %v68 = vunpack.c.l.b16 %v59
  %v69 = vunpack.c.l.b16 %v60
  %v70 = vunpack.c.l.b16 %v61
  %v71 = vunpack.c.l.b16 %v62
  %v72 = vpack.c.b16 %v69, %v68
  %v73 = vpack.c.b16 %v71, %v70
  %v77 = vsel %vm21, %v63, 0
  %79 = vmatpush.bf16.msra.mxu0 0
  %80 = vmatpush.bf16.msra.mxu0 0
  %81 = vmatpush.bf16.msra.mxu0 0
  %82 = vmatpush.bf16.msra.mxu0 0
  %83 = vmatpush.bf16.msra.mxu0 0
  %84 = vmatpush.bf16.msra.mxu0 0
  %85 = vmatpush.bf16.msra.mxu0 %v73
  %86 = vmatpush.bf16.msra.mxu0 %v72
  %87 = vmatmul.bf16.gmra.mxu0 %v77
  %v88 = vpop.f32.mrf.mxu0
  %v89 = vadd.f32 0.0, %v88
  %v90 = vpop.f32.mrf.mxu0
  %91 = vdwg.mxu0
  %92 = vst [vmem:[%s4] sm:$0xff] %v89
  // Predicated region
  $region18: #{text_encoder_pallas.3} parent=0 // pred_check
    _
  $region19: #{text_encoder_pallas.3} parent=0 // pred_check_branch
    %94 = sbr.rel (0) target = $region21
  $region20: #{text_encoder_pallas.3} parent=0 // pred_region
    _
  $region21: #{text_encoder_pallas.3} parent=0 // pred_fallthru
    _
  // Predicated region
  $region22: #{text_encoder_pallas.3} parent=0 // pred_check
    _
  $region23: #{text_encoder_pallas.3} parent=0 // pred_check_branch
    %96 = sbr.rel (0) target = $region25
  $region24: #{text_encoder_pallas.3} parent=0 // pred_region
    _
  $region25: #{text_encoder_pallas.3} parent=0 // pred_fallthru
    _

// kernel: text_encoder_pallas.2
$region0: #{text_encoder_pallas.2}
  #allocation0 [shape = 'u32[]', space=smem, size = 0x4, offset = 0x4, fixed_abs, tag = 'smem constant byte address 0x4 - core index']
  #allocation1 [shape = 'u32[72,128]{1,0:T(1,128)}', space=vmem, size = 0x9000, scoped, tag = 'internal scratch']
  %s0 = inlined_call_operand.vmem [shape: f32[2,8,32], index: 0, kind: input, shape index: {}, may-alias: {0,14}]
  %s1 = inlined_call_operand.vmem [shape: f32[8,8], index: 1, kind: input, shape index: {}]
  %s2 = inlined_call_operand.vmem [shape: f32[2,1,32], index: 2, kind: input, shape index: {}]
  %s3 = inlined_call_operand.vmem [shape: f32[2,1,32], index: 3, kind: input, shape index: {}]
  %s4 = inlined_call_operand.vmem [shape: bf16[2,32,96], index: 4, kind: input, shape index: {}]
  %s5 = inlined_call_operand.vmem [shape: f32[2,1,96], index: 5, kind: input, shape index: {}]
  %s6 = inlined_call_operand.vmem [shape: bf16[2,32,32], index: 6, kind: input, shape index: {}]
  %s7 = inlined_call_operand.vmem [shape: f32[2,1,32], index: 7, kind: input, shape index: {}]
  %s8 = inlined_call_operand.vmem [shape: f32[2,1,32], index: 8, kind: input, shape index: {}]
  %s9 = inlined_call_operand.vmem [shape: f32[2,1,32], index: 9, kind: input, shape index: {}]
  %s10 = inlined_call_operand.vmem [shape: bf16[2,32,128], index: 10, kind: input, shape index: {}]
  %s11 = inlined_call_operand.vmem [shape: f32[2,1,128], index: 11, kind: input, shape index: {}]
  %s12 = inlined_call_operand.vmem [shape: bf16[2,128,32], index: 12, kind: input, shape index: {}]
  %s13 = inlined_call_operand.vmem [shape: f32[2,1,32], index: 13, kind: input, shape index: {}]
  %s14 = inlined_call_operand.vmem [shape: f32[2,8,32], index: 14, kind: output, shape index: {}, may-alias: {0,14}]
  %s15 = sld [smem:[#allocation0]]
  $region93: #{text_encoder_pallas.2} parent=0
    _
  %s17 = ssub.s32 1, %s15
  %s18 = scalar_select 0, %s17, %s15
  loop: start=0, step=1, limit=4
  $region2: #{text_encoder_pallas.2} parent=0 // loop_pre_header
    _
  $region3: #{text_encoder_pallas.2} parent=0 // loop_header
    %s20 = sphi 0, %s24
    %p21 = scmp.ge.s32.totalorder %s20, 4
    %s27 = sphi 0, %s39
    %s28 = sphi 0, %s35
    %s29 = sphi 0, %s27
    %s30 = sphi 0, %s28
    %s31 = sphi 0, %s29
    %s32 = sphi 0, %s30
    %s42 = sphi 0, %s44
    %s45 = sphi 0, %s42
    %s46 = sphi 0, %s45
    %s62 = sphi 0, %s46
    %s66 = sphi 0, %s66
    %s68 = sphi 0, %s66
    %s69 = sphi 0, %s68
    %s83 = sphi 0, %s69
    %s89 = sphi 0, %s91
    %s92 = sphi 0, %s89
    %s93 = sphi 0, %s92
    %s109 = sphi 0, %s93
    %s115 = sphi 0, %s117
    %s118 = sphi 0, %s115
    %s119 = sphi 0, %s118
    %s135 = sphi 0, %s119
    %s141 = sphi 0, %s143
    %s144 = sphi 0, %s141
    %s145 = sphi 0, %s144
    %s161 = sphi 0, %s145
    %s167 = sphi 0, %s169
    %s170 = sphi 0, %s167
    %s171 = sphi 0, %s170
    %s187 = sphi 0, %s171
    %s193 = sphi 0, %s195
    %s196 = sphi 0, %s193
    %s197 = sphi 0, %s196
    %s213 = sphi 0, %s197
    %s219 = sphi 0, %s221
    %s222 = sphi 0, %s219
    %s223 = sphi 0, %s222
    %s239 = sphi 0, %s223
    %s245 = sphi 0, %s247
    %s248 = sphi 0, %s245
    %s249 = sphi 0, %s248
    %s265 = sphi 0, %s249
    %s271 = sphi 0, %s273
    %s274 = sphi 0, %s271
    %s275 = sphi 0, %s274
    %s291 = sphi 0, %s275
    %s297 = sphi 0, %s299
    %s300 = sphi 0, %s297
    %s301 = sphi 0, %s300
    %s317 = sphi 0, %s301
    %s323 = sphi 0, %s325
    %s326 = sphi 0, %s323
    %s327 = sphi 0, %s326
    %s343 = sphi 0, %s327
    %s349 = sphi 0, %s351
    %s352 = sphi 0, %s349
    %s353 = sphi 0, %s352
    %s369 = sphi 0, %s353
    %s375 = sphi 0, %s377
    %s378 = sphi 0, %s375
    %s379 = sphi 0, %s378
    %s395 = sphi 0, %s379
    %s401 = sphi 0, %s403
    %s404 = sphi 0, %s401
    %s405 = sphi 0, %s404
    %s421 = sphi 0, %s405
  $region4: #{text_encoder_pallas.2} parent=0 // loop_header_branch
    %23 = sbr.rel (%p21) target = $region8
  $region5: #{text_encoder_pallas.2} parent=0 // loop_body
    %s25 = ssub.s32 %s20, 1
    %s26 = ssub.s32 %s20, 2
    %s33 = sadd.s32 1, %s28
    %p34 = scmp.ge.s32.totalorder %s33, 2
    %s35 = scalar_select %p34, 0, %s33
    %s36 = sadd.s32 1, %s27
    %s37 = scalar_select %p34, %s36, %s27
    %p38 = scmp.ge.s32.totalorder %s37, 1
    %s39 = scalar_select %p38, 0, %s37
    %s40 = ssub.s32 %s27, %s39
    %p41 = scmp.eq.s32.totalorder %s40, 0
    %s43 = sadd.s32 %s42, 1
    %s44 = scalar_select %p41, %s42, %s43
    %p47 = pneg %p41
    %p48 = scmp.eq.s32.totalorder %s20, 1
    %p49 = por %p47, %p48
    %p50 = scmp.ne.s32.totalorder %s42, %s45
    %p51 = scmp.eq.s32.totalorder %s20, 0
    %p52 = por %p50, %p51
    %p53 = scmp.ne.s32.totalorder %s42, %s45
    %p54 = scmp.eq.s32.totalorder %s25, 1
    %p55 = por %p53, %p54
    %p56 = scmp.ne.s32.totalorder %s45, %s46
    %p57 = scmp.eq.s32.totalorder %s25, 0
    %p58 = por %p56, %p57
    %p59 = scmp.ne.s32.totalorder %s45, %s46
    %p60 = scmp.eq.s32.totalorder %s26, 1
    %p61 = por %p59, %p60
    %p63 = scmp.ne.s32.totalorder %s46, %s62
    %p64 = scmp.eq.s32.totalorder %s26, 0
    %p65 = por %p63, %p64
    %s67 = sadd.s32 %s66, 1
    %p70 = scmp.eq.s32.totalorder %s20, 1
    %p71 = scmp.ne.s32.totalorder %s66, %s68
    %p72 = scmp.eq.s32.totalorder %s20, 0
    %p73 = por %p71, %p72
    %p74 = scmp.ne.s32.totalorder %s66, %s68
    %p75 = scmp.eq.s32.totalorder %s25, 1
    %p76 = por %p74, %p75
    %p77 = scmp.ne.s32.totalorder %s68, %s69
    %p78 = scmp.eq.s32.totalorder %s25, 0
    %p79 = por %p77, %p78
    %p80 = scmp.ne.s32.totalorder %s68, %s69
    %p81 = scmp.eq.s32.totalorder %s26, 1
    %p82 = por %p80, %p81
    %p84 = scmp.ne.s32.totalorder %s69, %s83
    %p85 = scmp.eq.s32.totalorder %s26, 0
    %p86 = por %p84, %p85
    %s87 = ssub.s32 %s28, %s35
    %p88 = scmp.eq.s32.totalorder %s87, 0
    %s90 = sadd.s32 %s89, 1
    %s91 = scalar_select %p88, %s89, %s90
    %p94 = pneg %p88
    %p95 = scmp.eq.s32.totalorder %s20, 1
    %p96 = por %p94, %p95
    %p97 = scmp.ne.s32.totalorder %s89, %s92
    %p98 = scmp.eq.s32.totalorder %s20, 0
    %p99 = por %p97, %p98
    %p100 = scmp.ne.s32.totalorder %s89, %s92
    %p101 = scmp.eq.s32.totalorder %s25, 1
    %p102 = por %p100, %p101
    %p103 = scmp.ne.s32.totalorder %s92, %s93
    %p104 = scmp.eq.s32.totalorder %s25, 0
    %p105 = por %p103, %p104
    %p106 = scmp.ne.s32.totalorder %s92, %s93
    %p107 = scmp.eq.s32.totalorder %s26, 1
    %p108 = por %p106, %p107
    %p110 = scmp.ne.s32.totalorder %s93, %s109
    %p111 = scmp.eq.s32.totalorder %s26, 0
    %p112 = por %p110, %p111
    %s113 = ssub.s32 %s28, %s35
    %p114 = scmp.eq.s32.totalorder %s113, 0
    %s116 = sadd.s32 %s115, 1
    %s117 = scalar_select %p114, %s115, %s116
    %p120 = pneg %p114
    %p121 = scmp.eq.s32.totalorder %s20, 1
    %p122 = por %p120, %p121
    %p123 = scmp.ne.s32.totalorder %s115, %s118
    %p124 = scmp.eq.s32.totalorder %s20, 0
    %p125 = por %p123, %p124
    %p126 = scmp.ne.s32.totalorder %s115, %s118
    %p127 = scmp.eq.s32.totalorder %s25, 1
    %p128 = por %p126, %p127
    %p129 = scmp.ne.s32.totalorder %s118, %s119
    %p130 = scmp.eq.s32.totalorder %s25, 0
    %p131 = por %p129, %p130
    %p132 = scmp.ne.s32.totalorder %s118, %s119
    %p133 = scmp.eq.s32.totalorder %s26, 1
    %p134 = por %p132, %p133
    %p136 = scmp.ne.s32.totalorder %s119, %s135
    %p137 = scmp.eq.s32.totalorder %s26, 0
    %p138 = por %p136, %p137
    %s139 = ssub.s32 %s28, %s35
    %p140 = scmp.eq.s32.totalorder %s139, 0
    %s142 = sadd.s32 %s141, 1
    %s143 = scalar_select %p140, %s141, %s142
    %p146 = pneg %p140
    %p147 = scmp.eq.s32.totalorder %s20, 1
    %p148 = por %p146, %p147
    %p149 = scmp.ne.s32.totalorder %s141, %s144
    %p150 = scmp.eq.s32.totalorder %s20, 0
    %p151 = por %p149, %p150
    %p152 = scmp.ne.s32.totalorder %s141, %s144
    %p153 = scmp.eq.s32.totalorder %s25, 1
    %p154 = por %p152, %p153
    %p155 = scmp.ne.s32.totalorder %s144, %s145
    %p156 = scmp.eq.s32.totalorder %s25, 0
    %p157 = por %p155, %p156
    %p158 = scmp.ne.s32.totalorder %s144, %s145
    %p159 = scmp.eq.s32.totalorder %s26, 1
    %p160 = por %p158, %p159
    %p162 = scmp.ne.s32.totalorder %s145, %s161
    %p163 = scmp.eq.s32.totalorder %s26, 0
    %p164 = por %p162, %p163
    %s165 = ssub.s32 %s28, %s35
    %p166 = scmp.eq.s32.totalorder %s165, 0
    %s168 = sadd.s32 %s167, 1
    %s169 = scalar_select %p166, %s167, %s168
    %p172 = pneg %p166
    %p173 = scmp.eq.s32.totalorder %s20, 1
    %p174 = por %p172, %p173
    %p175 = scmp.ne.s32.totalorder %s167, %s170
    %p176 = scmp.eq.s32.totalorder %s20, 0
    %p177 = por %p175, %p176
    %p178 = scmp.ne.s32.totalorder %s167, %s170
    %p179 = scmp.eq.s32.totalorder %s25, 1
    %p180 = por %p178, %p179
    %p181 = scmp.ne.s32.totalorder %s170, %s171
    %p182 = scmp.eq.s32.totalorder %s25, 0
    %p183 = por %p181, %p182
    %p184 = scmp.ne.s32.totalorder %s170, %s171
    %p185 = scmp.eq.s32.totalorder %s26, 1
    %p186 = por %p184, %p185
    %p188 = scmp.ne.s32.totalorder %s171, %s187
    %p189 = scmp.eq.s32.totalorder %s26, 0
    %p190 = por %p188, %p189
    %s191 = ssub.s32 %s28, %s35
    %p192 = scmp.eq.s32.totalorder %s191, 0
    %s194 = sadd.s32 %s193, 1
    %s195 = scalar_select %p192, %s193, %s194
    %p198 = pneg %p192
    %p199 = scmp.eq.s32.totalorder %s20, 1
    %p200 = por %p198, %p199
    %p201 = scmp.ne.s32.totalorder %s193, %s196
    %p202 = scmp.eq.s32.totalorder %s20, 0
    %p203 = por %p201, %p202
    %p204 = scmp.ne.s32.totalorder %s193, %s196
    %p205 = scmp.eq.s32.totalorder %s25, 1
    %p206 = por %p204, %p205
    %p207 = scmp.ne.s32.totalorder %s196, %s197
    %p208 = scmp.eq.s32.totalorder %s25, 0
    %p209 = por %p207, %p208
    %p210 = scmp.ne.s32.totalorder %s196, %s197
    %p211 = scmp.eq.s32.totalorder %s26, 1
    %p212 = por %p210, %p211
    %p214 = scmp.ne.s32.totalorder %s197, %s213
    %p215 = scmp.eq.s32.totalorder %s26, 0
    %p216 = por %p214, %p215
    %s217 = ssub.s32 %s28, %s35
    %p218 = scmp.eq.s32.totalorder %s217, 0
    %s220 = sadd.s32 %s219, 1
    %s221 = scalar_select %p218, %s219, %s220
    %p224 = pneg %p218
    %p225 = scmp.eq.s32.totalorder %s20, 1
    %p226 = por %p224, %p225
    %p227 = scmp.ne.s32.totalorder %s219, %s222
    %p228 = scmp.eq.s32.totalorder %s20, 0
    %p229 = por %p227, %p228
    %p230 = scmp.ne.s32.totalorder %s219, %s222
    %p231 = scmp.eq.s32.totalorder %s25, 1
    %p232 = por %p230, %p231
    %p233 = scmp.ne.s32.totalorder %s222, %s223
    %p234 = scmp.eq.s32.totalorder %s25, 0
    %p235 = por %p233, %p234
    %p236 = scmp.ne.s32.totalorder %s222, %s223
    %p237 = scmp.eq.s32.totalorder %s26, 1
    %p238 = por %p236, %p237
    %p240 = scmp.ne.s32.totalorder %s223, %s239
    %p241 = scmp.eq.s32.totalorder %s26, 0
    %p242 = por %p240, %p241
    %s243 = ssub.s32 %s28, %s35
    %p244 = scmp.eq.s32.totalorder %s243, 0
    %s246 = sadd.s32 %s245, 1
    %s247 = scalar_select %p244, %s245, %s246
    %p250 = pneg %p244
    %p251 = scmp.eq.s32.totalorder %s20, 1
    %p252 = por %p250, %p251
    %p253 = scmp.ne.s32.totalorder %s245, %s248
    %p254 = scmp.eq.s32.totalorder %s20, 0
    %p255 = por %p253, %p254
    %p256 = scmp.ne.s32.totalorder %s245, %s248
    %p257 = scmp.eq.s32.totalorder %s25, 1
    %p258 = por %p256, %p257
    %p259 = scmp.ne.s32.totalorder %s248, %s249
    %p260 = scmp.eq.s32.totalorder %s25, 0
    %p261 = por %p259, %p260
    %p262 = scmp.ne.s32.totalorder %s248, %s249
    %p263 = scmp.eq.s32.totalorder %s26, 1
    %p264 = por %p262, %p263
    %p266 = scmp.ne.s32.totalorder %s249, %s265
    %p267 = scmp.eq.s32.totalorder %s26, 0
    %p268 = por %p266, %p267
    %s269 = ssub.s32 %s28, %s35
    %p270 = scmp.eq.s32.totalorder %s269, 0
    %s272 = sadd.s32 %s271, 1
    %s273 = scalar_select %p270, %s271, %s272
    %p276 = pneg %p270
    %p277 = scmp.eq.s32.totalorder %s20, 1
    %p278 = por %p276, %p277
    %p279 = scmp.ne.s32.totalorder %s271, %s274
    %p280 = scmp.eq.s32.totalorder %s20, 0
    %p281 = por %p279, %p280
    %p282 = scmp.ne.s32.totalorder %s271, %s274
    %p283 = scmp.eq.s32.totalorder %s25, 1
    %p284 = por %p282, %p283
    %p285 = scmp.ne.s32.totalorder %s274, %s275
    %p286 = scmp.eq.s32.totalorder %s25, 0
    %p287 = por %p285, %p286
    %p288 = scmp.ne.s32.totalorder %s274, %s275
    %p289 = scmp.eq.s32.totalorder %s26, 1
    %p290 = por %p288, %p289
    %p292 = scmp.ne.s32.totalorder %s275, %s291
    %p293 = scmp.eq.s32.totalorder %s26, 0
    %p294 = por %p292, %p293
    %s295 = ssub.s32 %s28, %s35
    %p296 = scmp.eq.s32.totalorder %s295, 0
    %s298 = sadd.s32 %s297, 1
    %s299 = scalar_select %p296, %s297, %s298
    %p302 = pneg %p296
    %p303 = scmp.eq.s32.totalorder %s20, 1
    %p304 = por %p302, %p303
    %p305 = scmp.ne.s32.totalorder %s297, %s300
    %p306 = scmp.eq.s32.totalorder %s20, 0
    %p307 = por %p305, %p306
    %p308 = scmp.ne.s32.totalorder %s297, %s300
    %p309 = scmp.eq.s32.totalorder %s25, 1
    %p310 = por %p308, %p309
    %p311 = scmp.ne.s32.totalorder %s300, %s301
    %p312 = scmp.eq.s32.totalorder %s25, 0
    %p313 = por %p311, %p312
    %p314 = scmp.ne.s32.totalorder %s300, %s301
    %p315 = scmp.eq.s32.totalorder %s26, 1
    %p316 = por %p314, %p315
    %p318 = scmp.ne.s32.totalorder %s301, %s317
    %p319 = scmp.eq.s32.totalorder %s26, 0
    %p320 = por %p318, %p319
    %s321 = ssub.s32 %s28, %s35
    %p322 = scmp.eq.s32.totalorder %s321, 0
    %s324 = sadd.s32 %s323, 1
    %s325 = scalar_select %p322, %s323, %s324
    %p328 = pneg %p322
    %p329 = scmp.eq.s32.totalorder %s20, 1
    %p330 = por %p328, %p329
    %p331 = scmp.ne.s32.totalorder %s323, %s326
    %p332 = scmp.eq.s32.totalorder %s20, 0
    %p333 = por %p331, %p332
    %p334 = scmp.ne.s32.totalorder %s323, %s326
    %p335 = scmp.eq.s32.totalorder %s25, 1
    %p336 = por %p334, %p335
    %p337 = scmp.ne.s32.totalorder %s326, %s327
    %p338 = scmp.eq.s32.totalorder %s25, 0
    %p339 = por %p337, %p338
    %p340 = scmp.ne.s32.totalorder %s326, %s327
    %p341 = scmp.eq.s32.totalorder %s26, 1
    %p342 = por %p340, %p341
    %p344 = scmp.ne.s32.totalorder %s327, %s343
    %p345 = scmp.eq.s32.totalorder %s26, 0
    %p346 = por %p344, %p345
    %s347 = ssub.s32 %s28, %s35
    %p348 = scmp.eq.s32.totalorder %s347, 0
    %s350 = sadd.s32 %s349, 1
    %s351 = scalar_select %p348, %s349, %s350
    %p354 = pneg %p348
    %p355 = scmp.eq.s32.totalorder %s20, 1
    %p356 = por %p354, %p355
    %p357 = scmp.ne.s32.totalorder %s349, %s352
    %p358 = scmp.eq.s32.totalorder %s20, 0
    %p359 = por %p357, %p358
    %p360 = scmp.ne.s32.totalorder %s349, %s352
    %p361 = scmp.eq.s32.totalorder %s25, 1
    %p362 = por %p360, %p361
    %p363 = scmp.ne.s32.totalorder %s352, %s353
    %p364 = scmp.eq.s32.totalorder %s25, 0
    %p365 = por %p363, %p364
    %p366 = scmp.ne.s32.totalorder %s352, %s353
    %p367 = scmp.eq.s32.totalorder %s26, 1
    %p368 = por %p366, %p367
    %p370 = scmp.ne.s32.totalorder %s353, %s369
    %p371 = scmp.eq.s32.totalorder %s26, 0
    %p372 = por %p370, %p371
    %s373 = ssub.s32 %s28, %s35
    %p374 = scmp.eq.s32.totalorder %s373, 0
    %s376 = sadd.s32 %s375, 1
    %s377 = scalar_select %p374, %s375, %s376
    %p380 = pneg %p374
    %p381 = scmp.eq.s32.totalorder %s20, 1
    %p382 = por %p380, %p381
    %p383 = scmp.ne.s32.totalorder %s375, %s378
    %p384 = scmp.eq.s32.totalorder %s20, 0
    %p385 = por %p383, %p384
    %p386 = scmp.ne.s32.totalorder %s375, %s378
    %p387 = scmp.eq.s32.totalorder %s25, 1
    %p388 = por %p386, %p387
    %p389 = scmp.ne.s32.totalorder %s378, %s379
    %p390 = scmp.eq.s32.totalorder %s25, 0
    %p391 = por %p389, %p390
    %p392 = scmp.ne.s32.totalorder %s378, %s379
    %p393 = scmp.eq.s32.totalorder %s26, 1
    %p394 = por %p392, %p393
    %p396 = scmp.ne.s32.totalorder %s379, %s395
    %p397 = scmp.eq.s32.totalorder %s26, 0
    %p398 = por %p396, %p397
    %s399 = ssub.s32 %s27, %s39
    %p400 = scmp.eq.s32.totalorder %s399, 0
    %s402 = sadd.s32 %s401, 1
    %s403 = scalar_select %p400, %s401, %s402
    %p406 = pneg %p400
    %p407 = scmp.eq.s32.totalorder %s20, 1
    %p408 = por %p406, %p407
    %p409 = scmp.ne.s32.totalorder %s401, %s404
    %p410 = scmp.eq.s32.totalorder %s20, 0
    %p411 = por %p409, %p410
    %p412 = scmp.ne.s32.totalorder %s401, %s404
    %p413 = scmp.eq.s32.totalorder %s25, 1
    %p414 = por %p412, %p413
    %p415 = scmp.ne.s32.totalorder %s404, %s405
    %p416 = scmp.eq.s32.totalorder %s25, 0
    %p417 = por %p415, %p416
    %p418 = scmp.ne.s32.totalorder %s404, %s405
    %p419 = scmp.eq.s32.totalorder %s26, 1
    %p420 = por %p418, %p419
    %p422 = scmp.ne.s32.totalorder %s405, %s421
    %p423 = scmp.eq.s32.totalorder %s26, 0
    %p424 = por %p422, %p423
    %p425 = scmp.le.s32.totalorder 1, %s20
    %p426 = scmp.lt.s32.totalorder %s20, 3
    %p427 = pnand %p425, %p426
    %p428 = pneg %p427
    // Predicated region
    $region9: #{text_encoder_pallas.2} parent=5 // pred_check
      _
    $region10: #{text_encoder_pallas.2} parent=5 // pred_check_branch
      %430 = sbr.rel (%p427) target = $region12
    $region11: #{text_encoder_pallas.2} parent=5 // pred_region
      %s431 = ssub.s32 %s20, 1
      // Predicated region
      $region13: #{text_encoder_pallas.2} parent=11 // pred_check
        %p432 = pneg %p58
      $region14: #{text_encoder_pallas.2} parent=11 // pred_check_branch
        %434 = sbr.rel (%p432) target = $region16
      $region15: #{text_encoder_pallas.2} parent=11 // pred_region
        %s435 = smul.u32 2, %s29
        %p436 = scmp.lt.s32.totalorder %s435, 1
        %s437 = scalar_select %p436, %s435, 1
        %s438 = smul.addr %s437, 8
        %s439 = scalar_lea.vmem %s0, %s438
        %s440 = smul.u32 2, %s29
      $region16: #{text_encoder_pallas.2} parent=11 // pred_fallthru
        _
      // Predicated region
      $region17: #{text_encoder_pallas.2} parent=11 // pred_check
        %p441 = pneg %p79
      $region18: #{text_encoder_pallas.2} parent=11 // pred_check_branch
        %443 = sbr.rel (%p441) target = $region20
      $region19: #{text_encoder_pallas.2} parent=11 // pred_region
        _
      $region20: #{text_encoder_pallas.2} parent=11 // pred_fallthru
        _
    $region12: #{text_encoder_pallas.2} parent=5 // pred_fallthru
      _
    %p444 = scmp.lt.s32.totalorder %s20, 2
    // Predicated region
    $region21: #{text_encoder_pallas.2} parent=5 // pred_check
      %p445 = pneg %p444
    $region22: #{text_encoder_pallas.2} parent=5 // pred_check_branch
      %447 = sbr.rel (%p445) target = $region24
    $region23: #{text_encoder_pallas.2} parent=5 // pred_region
      // Predicated region
      $region25: #{text_encoder_pallas.2} parent=23 // pred_check
        %p448 = pneg %p99
      $region26: #{text_encoder_pallas.2} parent=23 // pred_check_branch
        %450 = sbr.rel (%p448) target = $region28
      $region27: #{text_encoder_pallas.2} parent=23 // pred_region
        %p451 = scmp.lt.s32.totalorder %s28, 1
        %s452 = scalar_select %p451, %s28, 1
        %s453 = scalar_lea.vmem %s2, %s452
      $region28: #{text_encoder_pallas.2} parent=23 // pred_fallthru
        _
      // Predicated region
      $region29: #{text_encoder_pallas.2} parent=23 // pred_check
        %p454 = pneg %p125
      $region30: #{text_encoder_pallas.2} parent=23 // pred_check_branch
        %456 = sbr.rel (%p454) target = $region32
      $region31: #{text_encoder_pallas.2} parent=23 // pred_region
        %p457 = scmp.lt.s32.totalorder %s28, 1
        %s458 = scalar_select %p457, %s28, 1
        %s459 = scalar_lea.vmem %s3, %s458
      $region32: #{text_encoder_pallas.2} parent=23 // pred_fallthru
        _
      // Predicated region
      $region33: #{text_encoder_pallas.2} parent=23 // pred_check
        %p460 = pneg %p151
      $region34: #{text_encoder_pallas.2} parent=23 // pred_check_branch
        %462 = sbr.rel (%p460) target = $region36
      $region35: #{text_encoder_pallas.2} parent=23 // pred_region
        %p463 = scmp.lt.s32.totalorder %s28, 1
        %s464 = scalar_select %p463, %s28, 1
        %s465 = smul.addr %s464, 4
        %s466 = smul.addr %s465, 4
        %s467 = scalar_lea.vmem %s4, %s466
      $region36: #{text_encoder_pallas.2} parent=23 // pred_fallthru
        _
      // Predicated region
      $region37: #{text_encoder_pallas.2} parent=23 // pred_check
        %p468 = pneg %p177
      $region38: #{text_encoder_pallas.2} parent=23 // pred_check_branch
        %470 = sbr.rel (%p468) target = $region40
      $region39: #{text_encoder_pallas.2} parent=23 // pred_region
        %p471 = scmp.lt.s32.totalorder %s28, 1
        %s472 = scalar_select %p471, %s28, 1
        %s473 = scalar_lea.vmem %s5, %s472
      $region40: #{text_encoder_pallas.2} parent=23 // pred_fallthru
        _
      // Predicated region
      $region41: #{text_encoder_pallas.2} parent=23 // pred_check
        %p474 = pneg %p203
      $region42: #{text_encoder_pallas.2} parent=23 // pred_check_branch
        %476 = sbr.rel (%p474) target = $region44
      $region43: #{text_encoder_pallas.2} parent=23 // pred_region
        %p477 = scmp.lt.s32.totalorder %s28, 1
        %s478 = scalar_select %p477, %s28, 1
        %s479 = smul.addr %s478, 4
        %s480 = smul.addr %s479, 4
        %s481 = scalar_lea.vmem %s6, %s480
      $region44: #{text_encoder_pallas.2} parent=23 // pred_fallthru
        _
      // Predicated region
      $region45: #{text_encoder_pallas.2} parent=23 // pred_check
        %p482 = pneg %p229
      $region46: #{text_encoder_pallas.2} parent=23 // pred_check_branch
        %484 = sbr.rel (%p482) target = $region48
      $region47: #{text_encoder_pallas.2} parent=23 // pred_region
        %p485 = scmp.lt.s32.totalorder %s28, 1
        %s486 = scalar_select %p485, %s28, 1
        %s487 = scalar_lea.vmem %s7, %s486
      $region48: #{text_encoder_pallas.2} parent=23 // pred_fallthru
        _
      // Predicated region
      $region49: #{text_encoder_pallas.2} parent=23 // pred_check
        %p488 = pneg %p255
      $region50: #{text_encoder_pallas.2} parent=23 // pred_check_branch
        %490 = sbr.rel (%p488) target = $region52
      $region51: #{text_encoder_pallas.2} parent=23 // pred_region
        %p491 = scmp.lt.s32.totalorder %s28, 1
        %s492 = scalar_select %p491, %s28, 1
        %s493 = scalar_lea.vmem %s8, %s492
      $region52: #{text_encoder_pallas.2} parent=23 // pred_fallthru
        _
      // Predicated region
      $region53: #{text_encoder_pallas.2} parent=23 // pred_check
        %p494 = pneg %p281
      $region54: #{text_encoder_pallas.2} parent=23 // pred_check_branch
        %496 = sbr.rel (%p494) target = $region56
      $region55: #{text_encoder_pallas.2} parent=23 // pred_region
        %p497 = scmp.lt.s32.totalorder %s28, 1
        %s498 = scalar_select %p497, %s28, 1
        %s499 = scalar_lea.vmem %s9, %s498
      $region56: #{text_encoder_pallas.2} parent=23 // pred_fallthru
        _
      // Predicated region
      $region57: #{text_encoder_pallas.2} parent=23 // pred_check
        %p500 = pneg %p307
      $region58: #{text_encoder_pallas.2} parent=23 // pred_check_branch
        %502 = sbr.rel (%p500) target = $region60
      $region59: #{text_encoder_pallas.2} parent=23 // pred_region
        %p503 = scmp.lt.s32.totalorder %s28, 1
        %s504 = scalar_select %p503, %s28, 1
        %s505 = smul.addr %s504, 4
        %s506 = smul.addr %s505, 4
        %s507 = scalar_lea.vmem %s10, %s506
      $region60: #{text_encoder_pallas.2} parent=23 // pred_fallthru
        _
      // Predicated region
      $region61: #{text_encoder_pallas.2} parent=23 // pred_check
        %p508 = pneg %p333
      $region62: #{text_encoder_pallas.2} parent=23 // pred_check_branch
        %510 = sbr.rel (%p508) target = $region64
      $region63: #{text_encoder_pallas.2} parent=23 // pred_region
        %p511 = scmp.lt.s32.totalorder %s28, 1
        %s512 = scalar_select %p511, %s28, 1
        %s513 = scalar_lea.vmem %s11, %s512
      $region64: #{text_encoder_pallas.2} parent=23 // pred_fallthru
        _
      // Predicated region
      $region65: #{text_encoder_pallas.2} parent=23 // pred_check
        %p514 = pneg %p359
      $region66: #{text_encoder_pallas.2} parent=23 // pred_check_branch
        %516 = sbr.rel (%p514) target = $region68
      $region67: #{text_encoder_pallas.2} parent=23 // pred_region
        %p517 = scmp.lt.s32.totalorder %s28, 1
        %s518 = scalar_select %p517, %s28, 1
        %s519 = smul.addr %s518, 16
        %s520 = smul.addr %s519, 4
        %s521 = scalar_lea.vmem %s12, %s520
      $region68: #{text_encoder_pallas.2} parent=23 // pred_fallthru
        _
      // Predicated region
      $region69: #{text_encoder_pallas.2} parent=23 // pred_check
        %p522 = pneg %p385
      $region70: #{text_encoder_pallas.2} parent=23 // pred_check_branch
        %524 = sbr.rel (%p522) target = $region72
      $region71: #{text_encoder_pallas.2} parent=23 // pred_region
        %p525 = scmp.lt.s32.totalorder %s28, 1
        %s526 = scalar_select %p525, %s28, 1
        %s527 = scalar_lea.vmem %s13, %s526
      $region72: #{text_encoder_pallas.2} parent=23 // pred_fallthru
        _
    $region24: #{text_encoder_pallas.2} parent=5 // pred_fallthru
      _
    %p528 = scmp.le.s32.totalorder 1, %s20
    %p529 = scmp.lt.s32.totalorder %s20, 3
    %p530 = pnand %p528, %p529
    %p531 = pneg %p530
    // Predicated region
    $region73: #{text_encoder_pallas.2} parent=5 // pred_check
      _
    $region74: #{text_encoder_pallas.2} parent=5 // pred_check_branch
      %533 = sbr.rel (%p530) target = $region76
    $region75: #{text_encoder_pallas.2} parent=5 // pred_region
      %s534 = ssub.s32 %s20, 1
      %s535 = smul.u32 2, %s29
      %p536 = scmp.lt.s32.totalorder %s535, 1
      %s537 = scalar_select %p536, %s535, 1
      %s538 = smul.addr %s537, 8
      %s539 = scalar_lea.vmem %s0, %s538
      %p540 = pneg %p58
      %p541 = pneg %p55
      %p542 = pneg %p79
      %p543 = pneg %p76
      %p544 = scmp.lt.s32.totalorder %s30, 1
      %s545 = scalar_select %p544, %s30, 1
      %s546 = scalar_lea.vmem %s2, %s545
      %p547 = pneg %p105
      %p548 = pneg %p102
      %p549 = scmp.lt.s32.totalorder %s30, 1
      %s550 = scalar_select %p549, %s30, 1
      %s551 = scalar_lea.vmem %s3, %s550
      %p552 = pneg %p131
      %p553 = pneg %p128
      %p554 = scmp.lt.s32.totalorder %s30, 1
      %s555 = scalar_select %p554, %s30, 1
      %s556 = smul.addr %s555, 4
      %s557 = smul.addr %s556, 4
      %s558 = scalar_lea.vmem %s4, %s557
      %p559 = pneg %p157
      %p560 = pneg %p154
      %p561 = scmp.lt.s32.totalorder %s30, 1
      %s562 = scalar_select %p561, %s30, 1
      %s563 = scalar_lea.vmem %s5, %s562
      %p564 = pneg %p183
      %p565 = pneg %p180
      %p566 = scmp.lt.s32.totalorder %s30, 1
      %s567 = scalar_select %p566, %s30, 1
      %s568 = smul.addr %s567, 4
      %s569 = smul.addr %s568, 4
      %s570 = scalar_lea.vmem %s6, %s569
      %p571 = pneg %p209
      %p572 = pneg %p206
      %p573 = scmp.lt.s32.totalorder %s30, 1
      %s574 = scalar_select %p573, %s30, 1
      %s575 = scalar_lea.vmem %s7, %s574
      %p576 = pneg %p235
      %p577 = pneg %p232
      %p578 = scmp.lt.s32.totalorder %s30, 1
      %s579 = scalar_select %p578, %s30, 1
      %s580 = scalar_lea.vmem %s8, %s579
      %p581 = pneg %p261
      %p582 = pneg %p258
      %p583 = scmp.lt.s32.totalorder %s30, 1
      %s584 = scalar_select %p583, %s30, 1
      %s585 = scalar_lea.vmem %s9, %s584
      %p586 = pneg %p287
      %p587 = pneg %p284
      %p588 = scmp.lt.s32.totalorder %s30, 1
      %s589 = scalar_select %p588, %s30, 1
      %s590 = smul.addr %s589, 4
      %s591 = smul.addr %s590, 4
      %s592 = scalar_lea.vmem %s10, %s591
      %p593 = pneg %p313
      %p594 = pneg %p310
      %p595 = scmp.lt.s32.totalorder %s30, 1
      %s596 = scalar_select %p595, %s30, 1
      %s597 = scalar_lea.vmem %s11, %s596
      %p598 = pneg %p339
      %p599 = pneg %p336
      %p600 = scmp.lt.s32.totalorder %s30, 1
      %s601 = scalar_select %p600, %s30, 1
      %s602 = smul.addr %s601, 16
      %s603 = smul.addr %s602, 4
      %s604 = scalar_lea.vmem %s12, %s603
      %p605 = pneg %p365
      %p606 = pneg %p362
      %p607 = scmp.lt.s32.totalorder %s30, 1
      %s608 = scalar_select %p607, %s30, 1
      %s609 = scalar_lea.vmem %s13, %s608
      %p610 = pneg %p391
      %p611 = pneg %p388
      %p612 = pneg %p417
      %p613 = pneg %p414
      %s614 = smul.u32 2, %s29
      %p615 = scmp.lt.s32.totalorder %s614, 1
      %s616 = scalar_select %p615, %s614, 1
      %s617 = smul.addr %s616, 8
      %s618 = scalar_lea.vmem %s14, %s617
      %s619 = smul.u32 2, %s29
      %p620 = scmp.lt.s32.totalorder %s619, 1
      %s621 = scalar_select %p620, %s619, 1
      %s622 = smul.addr %s621, 8
      %s623 = scalar_lea.vmem %s0, %s622
      %s624 = smul.u32 2, %s29
      %p625 = scmp.lt.s32.totalorder %s30, 1
      %s626 = scalar_select %p625, %s30, 1
      %s627 = scalar_lea.vmem %s2, %s626
      %p628 = scmp.lt.s32.totalorder %s30, 1
      %s629 = scalar_select %p628, %s30, 1
      %s630 = scalar_lea.vmem %s3, %s629
      %p631 = scmp.lt.s32.totalorder %s30, 1
      %s632 = scalar_select %p631, %s30, 1
      %s633 = smul.addr %s632, 4
      %s634 = smul.addr %s633, 4
      %s635 = scalar_lea.vmem %s4, %s634
      %p636 = scmp.lt.s32.totalorder %s30, 1
      %s637 = scalar_select %p636, %s30, 1
      %s638 = scalar_lea.vmem %s5, %s637
      %p639 = scmp.lt.s32.totalorder %s30, 1
      %s640 = scalar_select %p639, %s30, 1
      %s641 = smul.addr %s640, 4
      %s642 = smul.addr %s641, 4
      %s643 = scalar_lea.vmem %s6, %s642
      %p644 = scmp.lt.s32.totalorder %s30, 1
      %s645 = scalar_select %p644, %s30, 1
      %s646 = scalar_lea.vmem %s7, %s645
      %p647 = scmp.lt.s32.totalorder %s30, 1
      %s648 = scalar_select %p647, %s30, 1
      %s649 = scalar_lea.vmem %s8, %s648
      %p650 = scmp.lt.s32.totalorder %s30, 1
      %s651 = scalar_select %p650, %s30, 1
      %s652 = scalar_lea.vmem %s9, %s651
      %p653 = scmp.lt.s32.totalorder %s30, 1
      %s654 = scalar_select %p653, %s30, 1
      %s655 = smul.addr %s654, 4
      %s656 = smul.addr %s655, 4
      %s657 = scalar_lea.vmem %s10, %s656
      %p658 = scmp.lt.s32.totalorder %s30, 1
      %s659 = scalar_select %p658, %s30, 1
      %s660 = scalar_lea.vmem %s11, %s659
      %p661 = scmp.lt.s32.totalorder %s30, 1
      %s662 = scalar_select %p661, %s30, 1
      %s663 = smul.addr %s662, 16
      %s664 = smul.addr %s663, 4
      %s665 = scalar_lea.vmem %s12, %s664
      %p666 = scmp.lt.s32.totalorder %s30, 1
      %s667 = scalar_select %p666, %s30, 1
      %s668 = scalar_lea.vmem %s13, %s667
      %s669 = smul.u32 2, %s29
      %p670 = scmp.lt.s32.totalorder %s669, 1
      %s671 = scalar_select %p670, %s669, 1
      %s672 = smul.addr %s671, 8
      %s673 = scalar_lea.vmem %s14, %s672
      %s674 = smul.u32 2, %s29
      %p676 = scmp.eq.s32.totalorder %s30, 0
      // Predicated region
      $region77: #{text_encoder_pallas.2} parent=75 // pred_check
        %p677 = pneg %p676
      $region78: #{text_encoder_pallas.2} parent=75 // pred_check_branch
        %679 = sbr.rel (%p677) target = $region80
      $region79: #{text_encoder_pallas.2} parent=75 // pred_region
        %v680 = vld [vmem:[%s623] sm:$0xff]
        %v681 = vld [vmem:[%s623 + $0x8] sm:$0xff]
        %vm682 = vcmask 261120
        %683 = vst.msk [vmem:[%s673] sm:$0xff] %vm682, %v680
        %684 = vst.msk [vmem:[%s673 + $0x8] sm:$0xff] %vm682, %v681
      $region80: #{text_encoder_pallas.2} parent=75 // pred_fallthru
        _
      %v685 = vld [vmem:[%s673] sm:$0xff]
      %v686 = vld [vmem:[%s673 + $0x8] sm:$0xff]
      %v687 = vld [vmem:[%s1] sm:$0xff]
      %v688 = vld [vmem:[%s627] sm:$0x1]
      %v689 = vld [vmem:[%s630] sm:$0x1]
      %vm690 = vcmask 261120
      %v691 = vsel %vm690, %v685, 0.0
      %692 = vadd.xlane.f32.xlu0 %v691
      %v693 = vpop.xlane.xlu0 %692
      %v694 = vsel %vm690, %v686, 0.0
      %695 = vadd.xlane.f32.xlu0 %v694
      %v696 = vpop.xlane.xlu0 %695
      %v697 = vrcp.pop 32.0
      %v698 = vmul.f32 32.0, %v697
      %v699 = vsub.f32 1.0, %v698
      %v700 = vmul.f32 %v697, %v699
      %v701 = vadd.f32 %v697, %v700
      %vm702 = vweird.f32 %v697
      %v703 = vsel %vm702, %v697, %v701
      %v704 = vmul.f32 %v693, %v703
      %v705 = vmul.f32 %v696, %v703
      %v706 = vsub.f32 %v685, %v704
      %v707 = vsub.f32 %v686, %v705
      %v708 = vmul.f32 %v706, %v706
      %v709 = vmul.f32 %v707, %v707
      %v710 = vsel %vm690, %v708, 0.0
      %711 = vadd.xlane.f32.xlu0 %v710
      %v712 = vpop.xlane.xlu0 %711
      %v713 = vsel %vm690, %v709, 0.0
      %714 = vadd.xlane.f32.xlu0 %v713
      %v715 = vpop.xlane.xlu0 %714
      %v716 = vmul.f32 %v712, %v703
      %v717 = vmul.f32 %v715, %v703
      %v718 = vadd.f32 %v716, 1e-05
      %v719 = vadd.f32 %v717, 1e-05
      %v720 = vrsqrt.pop %v718
      %v721 = vmul.f32 %v720, %v718
      %v722 = vmul.f32 %v721, %v720
      %v723 = vmul.f32 0.5, %v722
      %v724 = vsub.f32 1.5, %v723
      %v725 = vmul.f32 %v720, %v724
      %vm726 = vweird.f32 %v718
      %vm727 = vweird.f32 %v720
      %vm728 = vmor %vm726, %vm727
      %v729 = vsel %vm728, %v720, %v725
      %v730 = vrsqrt.pop %v719
      %v731 = vmul.f32 %v730, %v719
      %v732 = vmul.f32 %v731, %v730
      %v733 = vmul.f32 0.5, %v732
      %v734 = vsub.f32 1.5, %v733
      %v735 = vmul.f32 %v730, %v734
      %vm736 = vweird.f32 %v719
      %vm737 = vweird.f32 %v730
      %vm738 = vmor %vm736, %vm737
      %v739 = vsel %vm738, %v730, %v735
      %v740 = vmul.f32 %v706, %v729
      %v741 = vmul.f32 %v707, %v739
      %v743 = vperm.slane %v688, 0
      %v745 = vmul.f32 %v740, %v743
      %v746 = vmul.f32 %v741, %v743
      %v748 = vperm.slane %v689, 0
      %v750 = vadd.f32 %v745, %v748
      %v751 = vadd.f32 %v746, %v748
      %v752 = vld [vmem:[%s635] sm:$0xf]
      %v753 = vld [vmem:[%s635 + $0x4] sm:$0xf]
      %v754 = vld [vmem:[%s635 + $0x8] sm:$0xf]
      %v755 = vld [vmem:[%s635 + $0xc] sm:$0xf]
      %v756 = vpack.c.bf16 %v751, %v750
      %v757 = vld [vmem:[%s638] sm:$0x1]
      %v759 = vperm.slane %v757, 0
      %v765 = vunpack.c.l.b16 %v752
      %v766 = vunpack.c.l.b16 %v753
      %v767 = vunpack.c.l.b16 %v754
      %v768 = vunpack.c.l.b16 %v755
      %v769 = vpack.c.b16 %v766, %v765
      %v770 = vpack.c.b16 %v768, %v767
      %v774 = vsel %vm690, %v756, 0
      %776 = vmatpush.bf16.msra.mxu0 0
      %777 = vmatpush.bf16.msra.mxu0 0
      %778 = vmatpush.bf16.msra.mxu0 0
      %779 = vmatpush.bf16.msra.mxu0 0
      %780 = vmatpush.bf16.msra.mxu0 0
      %781 = vmatpush.bf16.msra.mxu0 0
      %782 = vmatpush.bf16.msra.mxu0 %v770
      %783 = vmatpush.bf16.msra.mxu0 %v769
      %784 = vmatmul.bf16.gmra.mxu0 %v774
      %v785 = vpop.f32.mrf.mxu0
      %v786 = vadd.f32 %v759, %v785
      %v787 = vpop.f32.mrf.mxu0
      %v788 = vadd.f32 %v759, %v787
      %789 = vdwg.mxu0
      %792 = vrot.lane.b32.xlu0 %v786, 112
      %v793 = vpop.permute.xlu0 %792
      %794 = vrot.lane.b32.xlu0 %v788, 112
      %v795 = vpop.permute.xlu0 %794
      %v798 = vpack.c.bf16 %v786, %v786
      %v799 = vpack.c.bf16 %v788, %v788
      %v800 = vpack.c.bf16 %v793, %v793
      %v801 = vpack.c.bf16 %v795, %v795
      %v803 = vunpack.c.l.b16 %v798
      %v804 = vpack.c.b16 %v803, %v803
      %805 = vrot.lane.b32.xlu0 %v804, 96
      %v806 = vpop.permute.xlu0 %805
      %vm807 = vcmask 130048
      %v809 = vsel %vm807, %v798, 0
      %v812 = vsel %vm807, %v806, 0
      %814 = vmatpush.bf16.xpose.msra.mxu0 0
      %815 = vmatpush.bf16.xpose.msra.mxu0 0
      %816 = vmatpush.bf16.xpose.msra.mxu0 0
      %817 = vmatpush.bf16.xpose.msra.mxu0 0
      %818 = vmatpush.bf16.xpose.msra.mxu0 0
      %819 = vmatpush.bf16.xpose.msra.mxu0 0
      %820 = vmatpush.bf16.xpose.msra.mxu0 0
      %821 = vmatpush.bf16.xpose.msra.mxu0 %v812
      %822 = vmatmul.bf16.gmra.mxu0 %v809
      %v823 = vpop.f32.mrf.mxu0
      %v824 = vadd.f32 %v687, %v823
      %v825 = vpop.f32.mrf.mxu0
      %826 = vdwg.mxu0
      %v828 = vunpack.c.l.b16 %v799
      %v829 = vpack.c.b16 %v828, %v828
      %830 = vrot.lane.b32.xlu0 %v829, 96
      %v831 = vpop.permute.xlu0 %830
      %v833 = vsel %vm807, %v799, 0
      %v836 = vsel %vm807, %v831, 0
      %838 = vmatpush.bf16.xpose.msra.mxu0 0
      %839 = vmatpush.bf16.xpose.msra.mxu0 0
      %840 = vmatpush.bf16.xpose.msra.mxu0 0
      %841 = vmatpush.bf16.xpose.msra.mxu0 0
      %842 = vmatpush.bf16.xpose.msra.mxu0 0
      %843 = vmatpush.bf16.xpose.msra.mxu0 0
      %844 = vmatpush.bf16.xpose.msra.mxu0 0
      %845 = vmatpush.bf16.xpose.msra.mxu0 %v836
      %846 = vmatmul.bf16.gmra.mxu0 %v833
      %v847 = vpop.f32.mrf.mxu0
      %v848 = vadd.f32 %v687, %v847
      %v849 = vpop.f32.mrf.mxu0
      %850 = vdwg.mxu0
      %v852 = vunpack.c.l.b16 %v800
      %v853 = vpack.c.b16 %v852, %v852
      %854 = vrot.lane.b32.xlu0 %v853, 96
      %v855 = vpop.permute.xlu0 %854
      %v857 = vsel %vm807, %v800, 0
      %v860 = vsel %vm807, %v855, 0
      %862 = vmatpush.bf16.xpose.msra.mxu0 0
      %863 = vmatpush.bf16.xpose.msra.mxu0 0
      %864 = vmatpush.bf16.xpose.msra.mxu0 0
      %865 = vmatpush.bf16.xpose.msra.mxu0 0
      %866 = vmatpush.bf16.xpose.msra.mxu0 0
      %867 = vmatpush.bf16.xpose.msra.mxu0 0
      %868 = vmatpush.bf16.xpose.msra.mxu0 0
      %869 = vmatpush.bf16.xpose.msra.mxu0 %v860
      %870 = vmatmul.bf16.gmra.mxu0 %v857
      %v871 = vpop.f32.mrf.mxu0
      %v872 = vadd.f32 %v687, %v871
      %v873 = vpop.f32.mrf.mxu0
      %874 = vdwg.mxu0
      %v876 = vunpack.c.l.b16 %v801
      %v877 = vpack.c.b16 %v876, %v876
      %878 = vrot.lane.b32.xlu0 %v877, 96
      %v879 = vpop.permute.xlu0 %878
      %v881 = vsel %vm807, %v801, 0
      %v884 = vsel %vm807, %v879, 0
      %886 = vmatpush.bf16.xpose.msra.mxu0 0
      %887 = vmatpush.bf16.xpose.msra.mxu0 0
      %888 = vmatpush.bf16.xpose.msra.mxu0 0
      %889 = vmatpush.bf16.xpose.msra.mxu0 0
      %890 = vmatpush.bf16.xpose.msra.mxu0 0
      %891 = vmatpush.bf16.xpose.msra.mxu0 0
      %892 = vmatpush.bf16.xpose.msra.mxu0 0
      %893 = vmatpush.bf16.xpose.msra.mxu0 %v884
      %894 = vmatmul.bf16.gmra.mxu0 %v881
      %v895 = vpop.f32.mrf.mxu0
      %v896 = vadd.f32 %v687, %v895
      %v897 = vpop.f32.mrf.mxu0
      %898 = vdwg.mxu0
      %vm899 = vcmask 64512
      %v900 = vsel %vm899, %v824, -inf
      %901 = vmax.xlane.f32.xlu0 %v900
      %v902 = vpop.xlane.xlu0 %901
      %v903 = vsel %vm899, %v848, -inf
      %904 = vmax.xlane.f32.xlu0 %v903
      %v905 = vpop.xlane.xlu0 %904
      %v906 = vsel %vm899, %v872, -inf
      %907 = vmax.xlane.f32.xlu0 %v906
      %v908 = vpop.xlane.xlu0 %907
      %v909 = vsel %vm899, %v896, -inf
      %910 = vmax.xlane.f32.xlu0 %v909
      %v911 = vpop.xlane.xlu0 %910
      %v912 = vsub.f32 %v824, %v902
      %v913 = vsub.f32 %v848, %v905
      %v914 = vsub.f32 %v872, %v908
      %v915 = vsub.f32 %v896, %v911
      %v916 = vmul.f32 %v912, 1.442695
      %v917 = vpow.pop %v916
      %v918 = vmul.f32 %v913, 1.442695
      %v919 = vpow.pop %v918
      %v920 = vmul.f32 %v914, 1.442695
      %v921 = vpow.pop %v920
      %v922 = vmul.f32 %v915, 1.442695
      %v923 = vpow.pop %v922
      %v924 = vsel %vm899, %v917, 0.0
      %925 = vadd.xlane.f32.xlu0 %v924
      %v926 = vpop.xlane.xlu0 %925
      %v927 = vsel %vm899, %v919, 0.0
      %928 = vadd.xlane.f32.xlu0 %v927
      %v929 = vpop.xlane.xlu0 %928
      %v930 = vsel %vm899, %v921, 0.0
      %931 = vadd.xlane.f32.xlu0 %v930
      %v932 = vpop.xlane.xlu0 %931
      %v933 = vsel %vm899, %v923, 0.0
      %934 = vadd.xlane.f32.xlu0 %v933
      %v935 = vpop.xlane.xlu0 %934
      %v936 = vrcp.pop %v926
      %v937 = vrcp.pop %v929
      %v938 = vrcp.pop %v932
      %v939 = vrcp.pop %v935
      %v940 = vmul.f32 %v917, %v936
      %v941 = vmul.f32 %v919, %v937
      %v942 = vmul.f32 %v921, %v938
      %v943 = vmul.f32 %v923, %v939
      %v944 = vpack.c.bf16 %v940, %v940
      %v945 = vpack.c.bf16 %v941, %v941
      %v946 = vpack.c.bf16 %v942, %v942
      %v947 = vpack.c.bf16 %v943, %v943
      %948 = vrot.lane.b32.xlu0 %v804, 64
      %v949 = vpop.permute.xlu0 %948
      %v951 = vsel %vm899, %v944, 0
      %vm953 = vcmask 1043456
      %v955 = vsel %vm953, %v949, 0
      %957 = vmatpush.bf16.msra.mxu0 0
      %958 = vmatpush.bf16.msra.mxu0 0
      %959 = vmatpush.bf16.msra.mxu0 0
      %960 = vmatpush.bf16.msra.mxu0 0
      %961 = vmatpush.bf16.msra.mxu0 0
      %962 = vmatpush.bf16.msra.mxu0 0
      %963 = vmatpush.bf16.msra.mxu0 0
      %964 = vmatpush.bf16.msra.mxu0 %v955
      %965 = vmatmul.bf16.gmra.mxu0 %v951
      %v966 = vpop.f32.mrf.mxu0
      %v967 = vadd.f32 0.0, %v966
      %v968 = vpop.f32.mrf.mxu0
      %969 = vdwg.mxu0
      %970 = vrot.lane.b32.xlu0 %v829, 64
      %v971 = vpop.permute.xlu0 %970
      %v973 = vsel %vm899, %v945, 0
      %v976 = vsel %vm953, %v971, 0
      %978 = vmatpush.bf16.msra.mxu0 0
      %979 = vmatpush.bf16.msra.mxu0 0
      %980 = vmatpush.bf16.msra.mxu0 0
      %981 = vmatpush.bf16.msra.mxu0 0
      %982 = vmatpush.bf16.msra.mxu0 0
      %983 = vmatpush.bf16.msra.mxu0 0
      %984 = vmatpush.bf16.msra.mxu0 0
      %985 = vmatpush.bf16.msra.mxu0 %v976
      %986 = vmatmul.bf16.gmra.mxu0 %v973
      %v987 = vpop.f32.mrf.mxu0
      %v988 = vadd.f32 0.0, %v987
      %v989 = vpop.f32.mrf.mxu0
      %990 = vdwg.mxu0
      %991 = vrot.lane.b32.xlu0 %v853, 64
      %v992 = vpop.permute.xlu0 %991
      %v994 = vsel %vm899, %v946, 0
      %v997 = vsel %vm953, %v992, 0
      %999 = vmatpush.bf16.msra.mxu0 0
      %1000 = vmatpush.bf16.msra.mxu0 0
      %1001 = vmatpush.bf16.msra.mxu0 0
      %1002 = vmatpush.bf16.msra.mxu0 0
      %1003 = vmatpush.bf16.msra.mxu0 0
      %1004 = vmatpush.bf16.msra.mxu0 0
      %1005 = vmatpush.bf16.msra.mxu0 0
      %1006 = vmatpush.bf16.msra.mxu0 %v997
      %1007 = vmatmul.bf16.gmra.mxu0 %v994
      %v1008 = vpop.f32.mrf.mxu0
      %v1009 = vadd.f32 0.0, %v1008
      %v1010 = vpop.f32.mrf.mxu0
      %1011 = vdwg.mxu0
      %1012 = vrot.lane.b32.xlu0 %v877, 64
      %v1013 = vpop.permute.xlu0 %1012
      %v1015 = vsel %vm899, %v947, 0
      %v1018 = vsel %vm953, %v1013, 0
      %1020 = vmatpush.bf16.msra.mxu0 0
      %1021 = vmatpush.bf16.msra.mxu0 0
      %1022 = vmatpush.bf16.msra.mxu0 0
      %1023 = vmatpush.bf16.msra.mxu0 0
      %1024 = vmatpush.bf16.msra.mxu0 0
      %1025 = vmatpush.bf16.msra.mxu0 0
      %1026 = vmatpush.bf16.msra.mxu0 0
      %1027 = vmatpush.bf16.msra.mxu0 %v1018
      %1028 = vmatmul.bf16.gmra.mxu0 %v1015
      %v1029 = vpop.f32.mrf.mxu0
      %v1030 = vadd.f32 0.0, %v1029
      %v1031 = vpop.f32.mrf.mxu0
      %1032 = vdwg.mxu0
      %1035 = vrot.lane.b32.xlu0 %v1009, 16
      %v1036 = vpop.permute.xlu0 %1035
      %1037 = vrot.lane.b32.xlu0 %v1030, 16
      %v1038 = vpop.permute.xlu0 %1037
      %v1041 = vsel %vm807, %v967, %v1036
      %v1042 = vsel %vm807, %v988, %v1038
      %v1043 = vld [vmem:[%s643] sm:$0xf]
      %v1044 = vld [vmem:[%s643 + $0x4] sm:$0xf]
      %v1045 = vld [vmem:[%s643 + $0x8] sm:$0xf]
      %v1046 = vld [vmem:[%s643 + $0xc] sm:$0xf]
      %v1047 = vpack.c.bf16 %v1042, %v1041
      %v1052 = vunpack.c.l.b16 %v1043
      %v1053 = vunpack.c.l.b16 %v1044
      %v1054 = vunpack.c.l.b16 %v1045
      %v1055 = vunpack.c.l.b16 %v1046
      %v1056 = vpack.c.b16 %v1053, %v1052
      %v1057 = vpack.c.b16 %v1055, %v1054
      %v1061 = vsel %vm690, %v1047, 0
      %1063 = vmatpush.bf16.msra.mxu0 0
      %1064 = vmatpush.bf16.msra.mxu0 0
      %1065 = vmatpush.bf16.msra.mxu0 0
      %1066 = vmatpush.bf16.msra.mxu0 0
      %1067 = vmatpush.bf16.msra.mxu0 0
      %1068 = vmatpush.bf16.msra.mxu0 0
      %1069 = vmatpush.bf16.msra.mxu0 %v1057
      %1070 = vmatpush.bf16.msra.mxu0 %v1056
      %1071 = vmatmul.bf16.gmra.mxu0 %v1061
      %v1072 = vpop.f32.mrf.mxu0
      %v1073 = vadd.f32 0.0, %v1072
      %v1074 = vpop.f32.mrf.mxu0
      %v1075 = vadd.f32 0.0, %v1074
      %1076 = vdwg.mxu0
      %v1077 = vadd.f32 %v685, %v1073
      %v1078 = vadd.f32 %v686, %v1075
      %v1079 = vld [vmem:[%s646] sm:$0x1]
      %v1081 = vperm.slane %v1079, 0
      %v1083 = vadd.f32 %v1077, %v1081
      %v1084 = vadd.f32 %v1078, %v1081
      %v1085 = vld [vmem:[%s649] sm:$0x1]
      %v1086 = vld [vmem:[%s652] sm:$0x1]
      %v1087 = vsel %vm690, %v1083, 0.0
      %1088 = vadd.xlane.f32.xlu0 %v1087
      %v1089 = vpop.xlane.xlu0 %1088
      %v1090 = vsel %vm690, %v1084, 0.0
      %1091 = vadd.xlane.f32.xlu0 %v1090
      %v1092 = vpop.xlane.xlu0 %1091
      %v1093 = vmul.f32 %v1089, %v703
      %v1094 = vmul.f32 %v1092, %v703
      %v1095 = vsub.f32 %v1083, %v1093
      %v1096 = vsub.f32 %v1084, %v1094
      %v1097 = vmul.f32 %v1095, %v1095
      %v1098 = vmul.f32 %v1096, %v1096
      %v1099 = vsel %vm690, %v1097, 0.0
      %1100 = vadd.xlane.f32.xlu0 %v1099
      %v1101 = vpop.xlane.xlu0 %1100
      %v1102 = vsel %vm690, %v1098, 0.0
      %1103 = vadd.xlane.f32.xlu0 %v1102
      %v1104 = vpop.xlane.xlu0 %1103
      %v1105 = vmul.f32 %v1101, %v703
      %v1106 = vmul.f32 %v1104, %v703
      %v1107 = vadd.f32 %v1105, 1e-05
      %v1108 = vadd.f32 %v1106, 1e-05
      %v1109 = vrsqrt.pop %v1107
      %v1110 = vmul.f32 %v1109, %v1107
      %v1111 = vmul.f32 %v1110, %v1109
      %v1112 = vmul.f32 0.5, %v1111
      %v1113 = vsub.f32 1.5, %v1112
      %v1114 = vmul.f32 %v1109, %v1113
      %vm1115 = vweird.f32 %v1107
      %vm1116 = vweird.f32 %v1109
      %vm1117 = vmor %vm1115, %vm1116
      %v1118 = vsel %vm1117, %v1109, %v1114
      %v1119 = vrsqrt.pop %v1108
      %v1120 = vmul.f32 %v1119, %v1108
      %v1121 = vmul.f32 %v1120, %v1119
      %v1122 = vmul.f32 0.5, %v1121
      %v1123 = vsub.f32 1.5, %v1122
      %v1124 = vmul.f32 %v1119, %v1123
      %vm1125 = vweird.f32 %v1108
      %vm1126 = vweird.f32 %v1119
      %vm1127 = vmor %vm1125, %vm1126
      %v1128 = vsel %vm1127, %v1119, %v1124
      %v1129 = vmul.f32 %v1095, %v1118
      %v1130 = vmul.f32 %v1096, %v1128
      %v1132 = vperm.slane %v1085, 0
      %v1134 = vmul.f32 %v1129, %v1132
      %v1135 = vmul.f32 %v1130, %v1132
      %v1137 = vperm.slane %v1086, 0
      %v1139 = vadd.f32 %v1134, %v1137
      %v1140 = vadd.f32 %v1135, %v1137
      %v1141 = vld [vmem:[%s657] sm:$0xf]
      %v1142 = vld [vmem:[%s657 + $0x4] sm:$0xf]
      %v1143 = vld [vmem:[%s657 + $0x8] sm:$0xf]
      %v1144 = vld [vmem:[%s657 + $0xc] sm:$0xf]
      %v1145 = vpack.c.bf16 %v1140, %v1139
      %v1146 = vld [vmem:[%s660] sm:$0x1]
      %v1148 = vperm.slane %v1146, 0
      %v1154 = vunpack.c.l.b16 %v1141
      %v1155 = vunpack.c.l.b16 %v1142
      %v1156 = vunpack.c.l.b16 %v1143
      %v1157 = vunpack.c.l.b16 %v1144
      %v1158 = vpack.c.b16 %v1155, %v1154
      %v1159 = vpack.c.b16 %v1157, %v1156
      %v1163 = vsel %vm690, %v1145, 0
      %1165 = vmatpush.bf16.msra.mxu0 0
      %1166 = vmatpush.bf16.msra.mxu0 0
      %1167 = vmatpush.bf16.msra.mxu0 0
      %1168 = vmatpush.bf16.msra.mxu0 0
      %1169 = vmatpush.bf16.msra.mxu0 0
      %1170 = vmatpush.bf16.msra.mxu0 0
      %1171 = vmatpush.bf16.msra.mxu0 %v1159
      %1172 = vmatpush.bf16.msra.mxu0 %v1158
      %1173 = vmatmul.bf16.gmra.mxu0 %v1163
      %v1174 = vpop.f32.mrf.mxu0
      %v1175 = vadd.f32 %v1148, %v1174
      %v1176 = vpop.f32.mrf.mxu0
      %v1177 = vadd.f32 %v1148, %v1176
      %1178 = vdwg.mxu0
      %v1179 = vmul.f32 %v1175, 1.702
      %v1180 = vmul.f32 %v1177, 1.702
      %v1181 = vxor.u32 %v1179, 2147483648
      %v1182 = vxor.u32 %v1180, 2147483648
      %v1183 = vmul.f32 %v1181, 1.442695
      %v1184 = vpow.pop %v1183
      %v1185 = vmul.f32 %v1182, 1.442695
      %v1186 = vpow.pop %v1185
      %v1187 = vadd.f32 %v1184, 1.0
      %v1188 = vadd.f32 %v1186, 1.0
      %v1189 = vrcp.pop %v1187
      %v1190 = vmul.f32 %v1187, %v1189
      %v1191 = vsub.f32 1.0, %v1190
      %v1192 = vmul.f32 %v1189, %v1191
      %v1193 = vadd.f32 %v1189, %v1192
      %vm1194 = vweird.f32 %v1187
      %vm1195 = vweird.f32 %v1189
      %vm1196 = vmor %vm1194, %vm1195
      %v1197 = vsel %vm1196, %v1189, %v1193
      %v1198 = vand.u32 2147483647, %v1187
      %vm1199 = vcmp.eq.f32.partialorder %v1198, 8.507059e+37
      %v1200 = vand.u32 %v1187, 2147483648
      %v1201 = vor.u32 1.1754944e-38, %v1200
      %v1202 = vsel %vm1199, %v1201, %v1197
      %v1203 = vmul.f32 1.0, %v1202
      %v1204 = vrcp.pop %v1188
      %v1205 = vmul.f32 %v1188, %v1204
      %v1206 = vsub.f32 1.0, %v1205
      %v1207 = vmul.f32 %v1204, %v1206
      %v1208 = vadd.f32 %v1204, %v1207
      %vm1209 = vweird.f32 %v1188
      %vm1210 = vweird.f32 %v1204
      %vm1211 = vmor %vm1209, %vm1210
      %v1212 = vsel %vm1211, %v1204, %v1208
      %v1213 = vand.u32 2147483647, %v1188
      %vm1214 = vcmp.eq.f32.partialorder %v1213, 8.507059e+37
      %v1215 = vand.u32 %v1188, 2147483648
      %v1216 = vor.u32 1.1754944e-38, %v1215
      %v1217 = vsel %vm1214, %v1216, %v1212
      %v1218 = vmul.f32 1.0, %v1217
      %v1219 = vmul.f32 %v1175, %v1203
      %v1220 = vmul.f32 %v1177, %v1218
      %v1221 = vld [vmem:[%s665] sm:$0xf]
      %v1222 = vld [vmem:[%s665 + $0x4] sm:$0xf]
      %v1223 = vld [vmem:[%s665 + $0x8] sm:$0xf]
      %v1224 = vld [vmem:[%s665 + $0xc] sm:$0xf]
      %v1225 = vld [vmem:[%s665 + $0x10] sm:$0xf]
      %v1226 = vld [vmem:[%s665 + $0x14] sm:$0xf]
      %v1227 = vld [vmem:[%s665 + $0x18] sm:$0xf]
      %v1228 = vld [vmem:[%s665 + $0x1c] sm:$0xf]
      %v1229 = vld [vmem:[%s665 + $0x20] sm:$0xf]
      %v1230 = vld [vmem:[%s665 + $0x24] sm:$0xf]
      %v1231 = vld [vmem:[%s665 + $0x28] sm:$0xf]
      %v1232 = vld [vmem:[%s665 + $0x2c] sm:$0xf]
      %v1233 = vld [vmem:[%s665 + $0x30] sm:$0xf]
      %v1234 = vld [vmem:[%s665 + $0x34] sm:$0xf]
      %v1235 = vld [vmem:[%s665 + $0x38] sm:$0xf]
      %v1236 = vld [vmem:[%s665 + $0x3c] sm:$0xf]
      %v1237 = vpack.c.bf16 %v1220, %v1219
      %v1254 = vunpack.c.l.b16 %v1221
      %v1255 = vunpack.c.l.b16 %v1222
      %v1256 = vunpack.c.l.b16 %v1223
      %v1257 = vunpack.c.l.b16 %v1224
      %v1258 = vunpack.c.l.b16 %v1225
      %v1259 = vunpack.c.l.b16 %v1226
      %v1260 = vunpack.c.l.b16 %v1227
      %v1261 = vunpack.c.l.b16 %v1228
      %v1262 = vunpack.c.l.b16 %v1229
      %v1263 = vunpack.c.l.b16 %v1230
      %v1264 = vunpack.c.l.b16 %v1231
      %v1265 = vunpack.c.l.b16 %v1232
      %v1266 = vunpack.c.l.b16 %v1233
      %v1267 = vunpack.c.l.b16 %v1234
      %v1268 = vunpack.c.l.b16 %v1235
      %v1269 = vunpack.c.l.b16 %v1236
      %v1270 = vpack.c.b16 %v1255, %v1254
      %v1271 = vpack.c.b16 %v1257, %v1256
      %v1272 = vpack.c.b16 %v1259, %v1258
      %v1273 = vpack.c.b16 %v1261, %v1260
      %v1274 = vpack.c.b16 %v1263, %v1262
      %v1275 = vpack.c.b16 %v1265, %v1264
      %v1276 = vpack.c.b16 %v1267, %v1266
      %v1277 = vpack.c.b16 %v1269, %v1268
      %1286 = vmatpush.bf16.msra.mxu0 %v1277
      %1287 = vmatpush.bf16.msra.mxu0 %v1276
      %1288 = vmatpush.bf16.msra.mxu0 %v1275
      %1289 = vmatpush.bf16.msra.mxu0 %v1274
      %1290 = vmatpush.bf16.msra.mxu0 %v1273
      %1291 = vmatpush.bf16.msra.mxu0 %v1272
      %1292 = vmatpush.bf16.msra.mxu0 %v1271
      %1293 = vmatpush.bf16.msra.mxu0 %v1270
      %1294 = vmatmul.bf16.gmra.mxu0 %v1237
      %v1295 = vpop.f32.mrf.mxu0
      %v1296 = vadd.f32 0.0, %v1295
      %v1297 = vpop.f32.mrf.mxu0
      %v1298 = vadd.f32 0.0, %v1297
      %1299 = vdwg.mxu0
      %v1300 = vadd.f32 %v1083, %v1296
      %v1301 = vadd.f32 %v1084, %v1298
      %v1302 = vld [vmem:[%s668] sm:$0x1]
      %v1304 = vperm.slane %v1302, 0
      %v1306 = vadd.f32 %v1300, %v1304
      %v1307 = vadd.f32 %v1301, %v1304
      %1308 = vst.msk [vmem:[%s673] sm:$0xff] %vm690, %v1306
      %1309 = vst.msk [vmem:[%s673 + $0x8] sm:$0xff] %vm690, %v1307
      %s1310 = smul.u32 2, %s29
      %p1311 = scmp.lt.s32.totalorder %s1310, 1
      %s1312 = scalar_select %p1311, %s1310, 1
      %s1313 = smul.addr %s1312, 8
      %s1314 = scalar_lea.vmem %s14, %s1313
      // Predicated region
      $region81: #{text_encoder_pallas.2} parent=75 // pred_check
        %p1315 = pneg %p414
      $region82: #{text_encoder_pallas.2} parent=75 // pred_check_branch
        %1317 = sbr.rel (%p1315) target = $region84
      $region83: #{text_encoder_pallas.2} parent=75 // pred_region
        %s1318 = smul.u32 2, %s29
      $region84: #{text_encoder_pallas.2} parent=75 // pred_fallthru
        _
      // Predicated region
      $region85: #{text_encoder_pallas.2} parent=75 // pred_check
        %p1319 = pneg %p414
      $region86: #{text_encoder_pallas.2} parent=75 // pred_check_branch
        %1321 = sbr.rel (%p1319) target = $region88
      $region87: #{text_encoder_pallas.2} parent=75 // pred_region
        %s1322 = smul.u32 2, %s29
        %p1323 = scmp.lt.s32.totalorder %s1322, 1
        %s1324 = scalar_select %p1323, %s1322, 1
        %s1325 = smul.addr %s1324, 8
        %s1326 = scalar_lea.vmem %s14, %s1325
      $region88: #{text_encoder_pallas.2} parent=75 // pred_fallthru
        _
    $region76: #{text_encoder_pallas.2} parent=5 // pred_fallthru
      _
    %p1327 = scmp.le.s32.totalorder 2, %s20
    // Predicated region
    $region89: #{text_encoder_pallas.2} parent=5 // pred_check
      %p1328 = pneg %p1327
    $region90: #{text_encoder_pallas.2} parent=5 // pred_check_branch
      %1330 = sbr.rel (%p1328) target = $region92
    $region91: #{text_encoder_pallas.2} parent=5 // pred_region
      %s1331 = ssub.s32 %s20, 2
    $region92: #{text_encoder_pallas.2} parent=5 // pred_fallthru
      _
  $region6: #{text_encoder_pallas.2} parent=0 // loop_footer
    %s24 = sadd.s32 1, %s20
  $region7: #{text_encoder_pallas.2} parent=0 // loop_footer_branch
    %19 = sbr.rel target = $region3
  $region8: #{text_encoder_pallas.2} parent=0 // loop_exit
    _

</llo_original>
